<compile_context>
chip_gen: v7x
topology: tpu7x:2x2x1
jax: 0.10.0
libtpu: 0.0.40
codegen_flags: <defaults>
</compile_context>

<pallas_src>
import jax
import jax.numpy as jnp
import numpy as np
from jax.experimental import pallas as pl
from jax.experimental.pallas import tpu as pltpu

E_H = 32    # edge MLP hidden width
E_OUT = 30  # edge MLP output width


def graph_gnn_kernel(feat_ref, geo_ref, wind_ref, scat_ref,
                     w1_ref, ewb1_ref, w2b2_ref, w3b3_ref, out_ref):
    """Fused edge MLP -> signed scatter (as bf16 matmul) -> node MLP.

    feat_ref : [R, 2*in_dim+2]  rows = batch-flattened edges
                                (node_src | node_tgt | edge_attr_norm)
    geo_ref  : [R, 2]           (city_direc, 3/city_dist) per edge row
    wind_ref : [2, 2]           row 0 = wind_mean, row 1 = wind_std
    scat_ref : [Rn, R] bf16     block-diagonal signed one-hot
                                (+1 at edge target, -1 at edge source)
    w1_ref   : [2*in_dim+2, E_H]
    ewb1_ref : [2, E_H]         row 0 = W1 row for edge_weight, row 1 = b1
    w2b2_ref : [E_H+1, E_OUT]   last row = b2
    w3b3_ref : [E_OUT+1, out_dim]  last row = b3
    out_ref  : [Rn, out_dim]    rows = batch-flattened nodes
    """
    feat = feat_ref[...]                                   # [R, F]
    in_dim = (feat.shape[1] - 2) // 2

    # ---- edge weight from de-normalized source wind -----------------------
    wind_mean = wind_ref[0:1, :]                           # [1, 2]
    wind_std = wind_ref[1:2, :]                            # [1, 2]
    src_wind = feat[:, in_dim - 2:in_dim] * wind_std + wind_mean   # [R, 2]
    speed = src_wind[:, 0:1]
    direc = src_wind[:, 1:2]
    cdir = geo_ref[:, 0:1]                                 # city_direc
    inv3dist = geo_ref[:, 1:2]                             # 3 / city_dist
    theta = jnp.abs(cdir - direc)
    # torch.cos works in radians; the (odd) 360/16 scaling is kept verbatim.
    edge_w = jnp.maximum(speed * jnp.cos(theta * (360.0 / 16.0)) * inv3dist,
                         0.0)                              # [R, 1]  (ReLU)

    # ---- edge MLP (single merged W1 matmul + edge_weight outer product) ----
    h1 = jnp.dot(feat, w1_ref[...], preferred_element_type=jnp.float32)
    h1 = jax.nn.sigmoid(h1 + edge_w * ewb1_ref[0:1, :] + ewb1_ref[1:2, :])
    h2 = jax.nn.sigmoid(
        jnp.dot(h1, w2b2_ref[:E_H, :], preferred_element_type=jnp.float32)
        + w2b2_ref[E_H:E_H + 1, :])                        # [R, E_OUT]

    # ---- reassociated tail: node-MLP weight BEFORE the scatter matmul ------
    # scat @ (h2 @ W3) == (scat @ h2) @ W3  (no nonlinearity in between)
    h3 = jnp.dot(h2, w3b3_ref[:E_OUT, :],
                 preferred_element_type=jnp.float32)       # [R, out_dim]

    # scatter_add(+h2 at target) + scatter_add(-h2 at source), folded with the
    # node-MLP weight, as one bf16 MXU matmul with f32 accumulation.
    agg = jnp.dot(scat_ref[...], h3.astype(jnp.bfloat16),
                  preferred_element_type=jnp.float32)      # [Rn, out_dim]

    out = jax.nn.sigmoid(agg + w3b3_ref[E_OUT:E_OUT + 1, :])
    out_ref[...] = out.astype(out_ref.dtype)


def graph_gnn_forward(x, edge_index, edge_attr, wind_mean, wind_std, params,
                      *, batch_groups=1):
    """GraphGNN forward.

    batch_groups: number of grid steps the flattened batch is split into.
      1 (default) = everything in a single fused step, best on single-core
      v5e/v6e.  On v7x with large B, use 2 (requires B % 2 == 0 and the
      per-group edge/node row counts to satisfy the (8,128) tile constraint)
      so each TensorCore takes half the batch via the "parallel" grid axis.
    """
    B, N, in_dim = x.shape
    E = edge_index.shape[1]
    out_dim = params["w3"].shape[1]
    F = 2 * in_dim + 2
    G = batch_groups
    assert B % G == 0
    if G > 1:
        # (8, 128) block constraints once the flattened arrays are tiled.
        assert (B * E // G) % 128 == 0 and (B * N // G) % 8 == 0

    edge_src = edge_index[0]
    edge_tgt = edge_index[1]

    # ---- wrapper-side glue (gathers / concat / constant tables) ------------
    # TODO(synk): the data-dependent edge gathers x[:, edge_src] / x[:, edge_tgt]
    # and the feature concat stay as XLA glue; in-kernel they would need a DMA
    # gather that is not worth it at these sizes.
    node_src = jnp.take(x, edge_src, axis=1)               # [B, E, in_dim]
    node_tgt = jnp.take(x, edge_tgt, axis=1)               # [B, E, in_dim]
    edge_norm = ((edge_attr - edge_attr.mean(axis=0))
                 / edge_attr.std(axis=0, ddof=1))          # torch std is unbiased
    feat = jnp.concatenate(
        [node_src, node_tgt, jnp.broadcast_to(edge_norm[None], (B, E, 2))],
        axis=-1).reshape(B * E, F).astype(jnp.float32)     # [B*E, F]

    # (city_direc, 3/city_dist) per edge row.  No epsilon on dist to preserve
    # the original module's semantics (synthetic data keeps dist >= 1).
    geo = jnp.tile(jnp.stack([edge_attr[:, 1], 3.0 / edge_attr[:, 0]], axis=1),
                   (B, 1)).astype(jnp.float32)             # [B*E, 2]

    nodes = jnp.arange(N)[:, None]
    scat = ((edge_tgt[None, :] == nodes).astype(jnp.float32)
            - (edge_src[None, :] == nodes).astype(jnp.float32))   # [N, E]
    # Block-diagonal over the batch; {-1, 0, +1} is exact in bf16.
    scat_bd = jnp.kron(jnp.eye(B, dtype=jnp.float32), scat).astype(jnp.bfloat16)

    wind = jnp.stack([wind_mean, wind_std], axis=0).astype(jnp.float32)  # [2,2]

    # Pack weights/biases -> 8 kernel operands total.
    w1 = jnp.concatenate([params["w1_src"], params["w1_tgt"],
                          params["w1_attr"]], axis=0)      # [F, E_H]
    ewb1 = jnp.concatenate([params["w1_ew"], params["b1"]], axis=0)     # [2, E_H]
    w2b2 = jnp.concatenate([params["w2"], params["b2"]], axis=0)        # [E_H+1, E_OUT]
    w3b3 = jnp.concatenate([params["w3"], params["b3"]], axis=0)        # [E_OUT+1, out_dim]

    re = B * E // G      # edge rows per grid step
    rn = B * N // G      # node rows per grid step
    # Batch-invariant operands use a constant index_map, so they are DMA'd
    # only once even if G > 1.
    const = lambda shape: pl.BlockSpec(shape, lambda g: (0, 0))

    out_flat = pl.pallas_call(
        graph_gnn_kernel,
        out_shape=jax.ShapeDtypeStruct((B * N, out_dim), jnp.float32),
        grid_spec=pltpu.PrefetchScalarGridSpec(
            num_scalar_prefetch=0,
            grid=(G,),
            in_specs=[
                pl.BlockSpec((re, F), lambda g: (g, 0)),   # feat (edge rows)
                pl.BlockSpec((re, 2), lambda g: (g, 0)),   # geo
                const((2, 2)),                             # [wind_mean; wind_std]
                pl.BlockSpec((rn, re), lambda g: (g, g)),  # scat (diag block)
                const((F, E_H)),                           # W1 (feature rows)
                const((2, E_H)),                           # [w1_edge_weight; b1]
                const((E_H + 1, E_OUT)),                   # [W2; b2]
                const((E_OUT + 1, out_dim)),               # [W3; b3]
            ],
            out_specs=pl.BlockSpec((rn, out_dim), lambda g: (g, 0)),
        ),
        compiler_params=pltpu.CompilerParams(
            dimension_semantics=("parallel",)),
    )(feat, geo, wind, scat_bd, w1, ewb1, w2b2, w3b3)

    return out_flat.reshape(B, N, out_dim)


def reference_forward(x, edge_index, edge_attr, wind_mean, wind_std, params):
    """Pure-JAX reference mirroring the PyTorch forward."""
    B, N, _ = x.shape
    edge_src, edge_tgt = edge_index[0], edge_index[1]
    node_src = x[:, edge_src]
    node_tgt = x[:, edge_tgt]
    src_wind = node_src[:, :, -2:] * wind_std[None, None, :] + wind_mean[None, None, :]
    speed = src_wind[:, :, 0]
    direc = src_wind[:, :, 1]
    city_dist = edge_attr[None, :, 0]
    city_direc = edge_attr[None, :, 1]
    theta = jnp.abs(city_direc - direc)
    edge_w = jax.nn.relu(3.0 * speed * jnp.cos(theta * 360.0 / 16.0) / city_dist)
    edge_norm = (edge_attr - edge_attr.mean(0)) / edge_attr.std(0, ddof=1)
    edge_norm = jnp.broadcast_to(edge_norm[None], (B,) + edge_norm.shape)
    feat = jnp.concatenate(
        [node_src, node_tgt, edge_norm, edge_w[..., None]], axis=-1)
    w1 = jnp.concatenate(
        [params["w1_src"], params["w1_tgt"], params["w1_attr"], params["w1_ew"]],
        axis=0)
    h1 = jax.nn.sigmoid(feat @ w1 + params["b1"])
    h2 = jax.nn.sigmoid(h1 @ params["w2"] + params["b2"])
    out_add = jnp.zeros((B, N, E_OUT)).at[:, edge_tgt].add(h2)
    out_sub = jnp.zeros((B, N, E_OUT)).at[:, edge_src].add(-h2)
    agg = out_add + out_sub
    return jax.nn.sigmoid(agg @ params["w3"] + params["b3"])


def init_params(key, in_dim, out_dim):
    """Deterministic synthetic parameters (PyTorch-Linear-style uniform init)."""
    ks = jax.random.split(key, 6)
    f_in1 = in_dim * 2 + 2 + 1
    k1 = 1.0 / np.sqrt(f_in1)
    k2 = 1.0 / np.sqrt(E_H)
    k3 = 1.0 / np.sqrt(E_OUT)
    w1 = jax.random.uniform(ks[0], (f_in1, E_H), jnp.float32, -k1, k1)
    return {
        "w1_src": w1[:in_dim],
        "w1_tgt": w1[in_dim:2 * in_dim],
        "w1_attr": w1[2 * in_dim:2 * in_dim + 2],
        "w1_ew": w1[2 * in_dim + 2:],
        "b1": jax.random.uniform(ks[1], (1, E_H), jnp.float32, -k1, k1),
        "w2": jax.random.uniform(ks[2], (E_H, E_OUT), jnp.float32, -k2, k2),
        "b2": jax.random.uniform(ks[3], (1, E_OUT), jnp.float32, -k2, k2),
        "w3": jax.random.uniform(ks[4], (E_OUT, out_dim), jnp.float32, -k3, k3),
        "b3": jax.random.uniform(ks[5], (1, out_dim), jnp.float32, -k3, k3),
    }


if __name__ == "__main__":
    B, N, E = 2, 16, 48
    in_dim, out_dim = 4, 8

    key = jax.random.PRNGKey(0)
    k_x, k_src, k_tgt, k_dist, k_dir, k_par = jax.random.split(key, 6)

    x = jax.random.normal(k_x, (B, N, in_dim), jnp.float32)
    edge_index = jnp.stack([
        jax.random.randint(k_src, (E,), 0, N),
        jax.random.randint(k_tgt, (E,), 0, N),
    ], axis=0)                                             # [2, E]
    edge_attr = jnp.stack([
        jax.random.uniform(k_dist, (E,), jnp.float32, 1.0, 10.0),   # city_dist
        jax.random.uniform(k_dir, (E,), jnp.float32, 0.0, 360.0),   # city_direc
    ], axis=1)                                             # [E, 2]
    wind_mean = jnp.array([2.0, 180.0], jnp.float32)
    wind_std = jnp.array([1.5, 90.0], jnp.float32)
    # NOTE: module params self.w / self.b are defined but unused in forward().

    params = init_params(k_par, in_dim, out_dim)

    out = graph_gnn_forward(x, edge_index, edge_attr, wind_mean, wind_std, params)
    out = jax.block_until_ready(out)

    ref = reference_forward(x, edge_index, edge_attr, wind_mean, wind_std, params)
    # The only approximation vs. the fp32 reference is the bf16 scatter matmul
    # (scat entries {-1,0,+1} are exact in bf16; h3 is bf16-rounded with f32
    # accumulation), so the tolerance is relaxed from 1e-4 accordingly.
    np.testing.assert_allclose(np.asarray(out), np.asarray(ref),
                               rtol=5e-3, atol=5e-3)
    print("KERNEL_OK")
</pallas_src>

<mosaic_0001>
module attributes {stable_mosaic.version = 11 : i64} {
  func.func @graph_gnn_kernel(%arg0: i32, %arg1: memref<96x10xf32, #tpu.memory_space<vmem>>, %arg2: memref<96x2xf32, #tpu.memory_space<vmem>>, %arg3: memref<2x2xf32, #tpu.memory_space<vmem>>, %arg4: memref<32x96xbf16, #tpu.memory_space<vmem>>, %arg5: memref<10x32xf32, #tpu.memory_space<vmem>>, %arg6: memref<2x32xf32, #tpu.memory_space<vmem>>, %arg7: memref<33x30xf32, #tpu.memory_space<vmem>>, %arg8: memref<31x8xf32, #tpu.memory_space<vmem>>, %arg9: memref<32x8xf32, #tpu.memory_space<vmem>>) attributes {dimension_semantics = [#tpu.dimension_semantics<parallel>], iteration_bounds = array<i64: 1>, scalar_prefetch = 0 : i64, scratch_operands = 0 : i64, tpu.core_type = #tpu.core_type<tc>, window_params = [{transform_indices = @transform_0, window_bounds = array<i64: 96, 10>}, {transform_indices = @transform_1, window_bounds = array<i64: 96, 2>}, {pipeline_mode = #tpu.pipeline_mode<synchronous>, transform_indices = @transform_2, window_bounds = array<i64: 2, 2>}, {transform_indices = @transform_3, window_bounds = array<i64: 32, 96>}, {pipeline_mode = #tpu.pipeline_mode<synchronous>, transform_indices = @transform_4, window_bounds = array<i64: 10, 32>}, {pipeline_mode = #tpu.pipeline_mode<synchronous>, transform_indices = @transform_5, window_bounds = array<i64: 2, 32>}, {pipeline_mode = #tpu.pipeline_mode<synchronous>, transform_indices = @transform_6, window_bounds = array<i64: 33, 30>}, {pipeline_mode = #tpu.pipeline_mode<synchronous>, transform_indices = @transform_7, window_bounds = array<i64: 31, 8>}, {transform_indices = @transform_8, window_bounds = array<i64: 32, 8>}]} {
    %c0 = arith.constant 0 : index
    %c0_0 = arith.constant 0 : index
    %0 = vector.load %arg1[%c0, %c0_0] : memref<96x10xf32, #tpu.memory_space<vmem>>, vector<96x10xf32>
    %c0_1 = arith.constant 0 : index
    %c0_2 = arith.constant 0 : index
    %1 = vector.load %arg3[%c0_1, %c0_2] : memref<2x2xf32, #tpu.memory_space<vmem>>, vector<1x2xf32>
    %c1 = arith.constant 1 : index
    %c0_3 = arith.constant 0 : index
    %2 = vector.load %arg3[%c1, %c0_3] : memref<2x2xf32, #tpu.memory_space<vmem>>, vector<1x2xf32>
    %3 = vector.extract_strided_slice %0 {offsets = [0, 2], sizes = [96, 2], strides = [1, 1]} : vector<96x10xf32> to vector<96x2xf32>
    %4 = vector.broadcast %2 : vector<1x2xf32> to vector<96x2xf32>
    %5 = arith.mulf %3, %4 : vector<96x2xf32>
    %6 = vector.broadcast %1 : vector<1x2xf32> to vector<96x2xf32>
    %7 = arith.addf %5, %6 : vector<96x2xf32>
    %8 = vector.extract_strided_slice %7 {offsets = [0, 0], sizes = [96, 1], strides = [1, 1]} : vector<96x2xf32> to vector<96x1xf32>
    %9 = vector.extract_strided_slice %7 {offsets = [0, 1], sizes = [96, 1], strides = [1, 1]} : vector<96x2xf32> to vector<96x1xf32>
    %c0_4 = arith.constant 0 : index
    %c0_5 = arith.constant 0 : index
    %10 = vector.load %arg2[%c0_4, %c0_5] : memref<96x2xf32, #tpu.memory_space<vmem>>, vector<96x1xf32>
    %c0_6 = arith.constant 0 : index
    %c1_7 = arith.constant 1 : index
    %11 = vector.load %arg2[%c0_6, %c1_7] : memref<96x2xf32, #tpu.memory_space<vmem>>, vector<96x1xf32>
    %12 = arith.subf %10, %9 : vector<96x1xf32>
    %13 = math.absf %12 : vector<96x1xf32>
    %cst = arith.constant 2.250000e+01 : f32
    %14 = vector.broadcast %cst : f32 to vector<96x1xf32>
    %15 = arith.mulf %13, %14 : vector<96x1xf32>
    %16 = math.cos %15 : vector<96x1xf32>
    %17 = arith.mulf %8, %16 : vector<96x1xf32>
    %18 = arith.mulf %17, %11 : vector<96x1xf32>
    %cst_8 = arith.constant 0.000000e+00 : f32
    %19 = vector.broadcast %cst_8 : f32 to vector<96x1xf32>
    %20 = arith.maximumf %18, %19 : vector<96x1xf32>
    %c0_9 = arith.constant 0 : index
    %c0_10 = arith.constant 0 : index
    %21 = vector.load %arg5[%c0_9, %c0_10] : memref<10x32xf32, #tpu.memory_space<vmem>>, vector<10x32xf32>
    %cst_11 = arith.constant dense<0.000000e+00> : vector<96x32xf32>
    %22 = tpu.matmul %0, %21, %cst_11 {dimension_numbers = #tpu.dot_dimension_numbers<[1], [0], [0], [1], [0, 0, 1, 1], [], []>} : vector<96x10xf32>, vector<10x32xf32>, vector<96x32xf32> -> vector<96x32xf32>
    %c0_12 = arith.constant 0 : index
    %c0_13 = arith.constant 0 : index
    %23 = vector.load %arg6[%c0_12, %c0_13] : memref<2x32xf32, #tpu.memory_space<vmem>>, vector<1x32xf32>
    %24 = vector.broadcast %20 : vector<96x1xf32> to vector<96x32xf32>
    %25 = vector.broadcast %23 : vector<1x32xf32> to vector<96x32xf32>
    %26 = arith.mulf %24, %25 : vector<96x32xf32>
    %27 = arith.addf %22, %26 : vector<96x32xf32>
    %c1_14 = arith.constant 1 : index
    %c0_15 = arith.constant 0 : index
    %28 = vector.load %arg6[%c1_14, %c0_15] : memref<2x32xf32, #tpu.memory_space<vmem>>, vector<1x32xf32>
    %29 = vector.broadcast %28 : vector<1x32xf32> to vector<96x32xf32>
    %30 = arith.addf %27, %29 : vector<96x32xf32>
    %31 = arith.negf %30 : vector<96x32xf32>
    %32 = math.exp %31 : vector<96x32xf32>
    %cst_16 = arith.constant 1.000000e+00 : f32
    %33 = vector.broadcast %cst_16 : f32 to vector<96x32xf32>
    %34 = arith.addf %33, %32 : vector<96x32xf32>
    %35 = arith.divf %33, %34 : vector<96x32xf32>
    %c0_17 = arith.constant 0 : index
    %c0_18 = arith.constant 0 : index
    %36 = vector.load %arg7[%c0_17, %c0_18] : memref<33x30xf32, #tpu.memory_space<vmem>>, vector<32x30xf32>
    %cst_19 = arith.constant dense<0.000000e+00> : vector<96x30xf32>
    %37 = tpu.matmul %35, %36, %cst_19 {dimension_numbers = #tpu.dot_dimension_numbers<[1], [0], [0], [1], [0, 0, 1, 1], [], []>} : vector<96x32xf32>, vector<32x30xf32>, vector<96x30xf32> -> vector<96x30xf32>
    %c32 = arith.constant 32 : index
    %c0_20 = arith.constant 0 : index
    %38 = vector.load %arg7[%c32, %c0_20] : memref<33x30xf32, #tpu.memory_space<vmem>>, vector<1x30xf32>
    %39 = vector.broadcast %38 : vector<1x30xf32> to vector<96x30xf32>
    %40 = arith.addf %37, %39 : vector<96x30xf32>
    %41 = arith.negf %40 : vector<96x30xf32>
    %42 = math.exp %41 : vector<96x30xf32>
    %cst_21 = arith.constant 1.000000e+00 : f32
    %43 = vector.broadcast %cst_21 : f32 to vector<96x30xf32>
    %44 = arith.addf %43, %42 : vector<96x30xf32>
    %45 = arith.divf %43, %44 : vector<96x30xf32>
    %c0_22 = arith.constant 0 : index
    %c0_23 = arith.constant 0 : index
    %46 = vector.load %arg8[%c0_22, %c0_23] : memref<31x8xf32, #tpu.memory_space<vmem>>, vector<30x8xf32>
    %cst_24 = arith.constant dense<0.000000e+00> : vector<96x8xf32>
    %47 = tpu.matmul %45, %46, %cst_24 {dimension_numbers = #tpu.dot_dimension_numbers<[1], [0], [0], [1], [0, 0, 1, 1], [], []>} : vector<96x30xf32>, vector<30x8xf32>, vector<96x8xf32> -> vector<96x8xf32>
    %c0_25 = arith.constant 0 : index
    %c0_26 = arith.constant 0 : index
    %48 = vector.load %arg4[%c0_25, %c0_26] : memref<32x96xbf16, #tpu.memory_space<vmem>>, vector<32x96xbf16>
    %49 = arith.truncf %47 : vector<96x8xf32> to vector<96x8xbf16>
    %cst_27 = arith.constant dense<0.000000e+00> : vector<32x8xf32>
    %50 = tpu.matmul %48, %49, %cst_27 {dimension_numbers = #tpu.dot_dimension_numbers<[1], [0], [0], [1], [0, 0, 1, 1], [], []>} : vector<32x96xbf16>, vector<96x8xbf16>, vector<32x8xf32> -> vector<32x8xf32>
    %c30 = arith.constant 30 : index
    %c0_28 = arith.constant 0 : index
    %51 = vector.load %arg8[%c30, %c0_28] : memref<31x8xf32, #tpu.memory_space<vmem>>, vector<1x8xf32>
    %52 = vector.broadcast %51 : vector<1x8xf32> to vector<32x8xf32>
    %53 = arith.addf %50, %52 : vector<32x8xf32>
    %54 = arith.negf %53 : vector<32x8xf32>
    %55 = math.exp %54 : vector<32x8xf32>
    %cst_29 = arith.constant 1.000000e+00 : f32
    %56 = vector.broadcast %cst_29 : f32 to vector<32x8xf32>
    %57 = arith.addf %56, %55 : vector<32x8xf32>
    %58 = arith.divf %56, %57 : vector<32x8xf32>
    %c0_30 = arith.constant 0 : index
    %c0_31 = arith.constant 0 : index
    %59 = vector.load %arg9[%c0_30, %c0_31] : memref<32x8xf32, #tpu.memory_space<vmem>>, vector<32x8xf32>
    tpu.vector_store %arg9[%c0_30, %c0_31], %58 {strides = array<i32>} : memref<32x8xf32, #tpu.memory_space<vmem>>, vector<32x8xf32>,
    return
  }
  func.func @transform_0(%arg0: i32) -> (i32, i32) {
    %c0_i32 = arith.constant 0 : i32
    %c0_i32_0 = arith.constant 0 : i32
    return %arg0, %c0_i32 : i32, i32
  }
  func.func @transform_1(%arg0: i32) -> (i32, i32) {
    %c0_i32 = arith.constant 0 : i32
    %c0_i32_0 = arith.constant 0 : i32
    return %arg0, %c0_i32 : i32, i32
  }
  func.func @transform_2(%arg0: i32) -> (i32, i32) {
    %c0_i32 = arith.constant 0 : i32
    %c0_i32_0 = arith.constant 0 : i32
    %c0_i32_1 = arith.constant 0 : i32
    return %c0_i32, %c0_i32_0 : i32, i32
  }
  func.func @transform_3(%arg0: i32) -> (i32, i32) {
    %c0_i32 = arith.constant 0 : i32
    return %arg0, %arg0 : i32, i32
  }
  func.func @transform_4(%arg0: i32) -> (i32, i32) {
    %c0_i32 = arith.constant 0 : i32
    %c0_i32_0 = arith.constant 0 : i32
    %c0_i32_1 = arith.constant 0 : i32
    return %c0_i32, %c0_i32_0 : i32, i32
  }
  func.func @transform_5(%arg0: i32) -> (i32, i32) {
    %c0_i32 = arith.constant 0 : i32
    %c0_i32_0 = arith.constant 0 : i32
    %c0_i32_1 = arith.constant 0 : i32
    return %c0_i32, %c0_i32_0 : i32, i32
  }
  func.func @transform_6(%arg0: i32) -> (i32, i32) {
    %c0_i32 = arith.constant 0 : i32
    %c0_i32_0 = arith.constant 0 : i32
    %c0_i32_1 = arith.constant 0 : i32
    return %c0_i32, %c0_i32_0 : i32, i32
  }
  func.func @transform_7(%arg0: i32) -> (i32, i32) {
    %c0_i32 = arith.constant 0 : i32
    %c0_i32_0 = arith.constant 0 : i32
    %c0_i32_1 = arith.constant 0 : i32
    return %c0_i32, %c0_i32_0 : i32, i32
  }
  func.func @transform_8(%arg0: i32) -> (i32, i32) {
    %c0_i32 = arith.constant 0 : i32
    %c0_i32_0 = arith.constant 0 : i32
    return %arg0, %c0_i32 : i32, i32
  }
}

</mosaic_0001>

<llo_original>
// kernel: tpu_custom_call.1
$region0: #{tpu_custom_call.1}
  #allocation0 [shape = 'u32[]', space=smem, size = 0x4, offset = 0x4, fixed_abs, tag = 'smem constant byte address 0x4 - core index']
  #allocation1 [shape = 'u32[144,128]{1,0:T(1,128)}', space=vmem, size = 0x12000, scoped, tag = 'internal scratch']
  %s0 = inlined_call_operand.vmem [shape: f32[96,10], index: 0, kind: input, shape index: {}]
  %s1 = inlined_call_operand.vmem [shape: f32[96,2], index: 1, kind: input, shape index: {}]
  %s2 = inlined_call_operand.vmem [shape: f32[2,2], index: 2, kind: input, shape index: {}]
  %s3 = inlined_call_operand.vmem [shape: bf16[32,96], index: 3, kind: input, shape index: {}]
  %s4 = inlined_call_operand.vmem [shape: f32[10,32], index: 4, kind: input, shape index: {}]
  %s5 = inlined_call_operand.vmem [shape: f32[2,32], index: 5, kind: input, shape index: {}]
  %s6 = inlined_call_operand.vmem [shape: f32[33,30], index: 6, kind: input, shape index: {}]
  %s7 = inlined_call_operand.vmem [shape: f32[31,8], index: 7, kind: input, shape index: {}]
  %s8 = inlined_call_operand.vmem [shape: f32[32,8], index: 8, kind: output, shape index: {}]
  %s9 = sld [smem:[#allocation0]]
  $region42: #{tpu_custom_call.1} parent=0
    _
  %s11 = ssub.s32 1, %s9
  %s12 = scalar_select 0, %s11, %s9
  // Predicated region
  $region2: #{tpu_custom_call.1} parent=0 // pred_check
    _
  $region3: #{tpu_custom_call.1} parent=0 // pred_check_branch
    %14 = sbr.rel (0) target = $region5
  $region4: #{tpu_custom_call.1} parent=0 // pred_region
    _
  $region5: #{tpu_custom_call.1} parent=0 // pred_fallthru
    _
  // Predicated region
  $region6: #{tpu_custom_call.1} parent=0 // pred_check
    _
  $region7: #{tpu_custom_call.1} parent=0 // pred_check_branch
    %16 = sbr.rel (0) target = $region9
  $region8: #{tpu_custom_call.1} parent=0 // pred_region
    _
  $region9: #{tpu_custom_call.1} parent=0 // pred_fallthru
    _
  // Predicated region
  $region10: #{tpu_custom_call.1} parent=0 // pred_check
    _
  $region11: #{tpu_custom_call.1} parent=0 // pred_check_branch
    %18 = sbr.rel (0) target = $region13
  $region12: #{tpu_custom_call.1} parent=0 // pred_region
    _
  $region13: #{tpu_custom_call.1} parent=0 // pred_fallthru
    _
  // Predicated region
  $region14: #{tpu_custom_call.1} parent=0 // pred_check
    _
  $region15: #{tpu_custom_call.1} parent=0 // pred_check_branch
    %20 = sbr.rel (0) target = $region17
  $region16: #{tpu_custom_call.1} parent=0 // pred_region
    _
  $region17: #{tpu_custom_call.1} parent=0 // pred_fallthru
    _
  // Predicated region
  $region18: #{tpu_custom_call.1} parent=0 // pred_check
    _
  $region19: #{tpu_custom_call.1} parent=0 // pred_check_branch
    %22 = sbr.rel (0) target = $region21
  $region20: #{tpu_custom_call.1} parent=0 // pred_region
    _
  $region21: #{tpu_custom_call.1} parent=0 // pred_fallthru
    _
  // Predicated region
  $region22: #{tpu_custom_call.1} parent=0 // pred_check
    _
  $region23: #{tpu_custom_call.1} parent=0 // pred_check_branch
    %24 = sbr.rel (0) target = $region25
  $region24: #{tpu_custom_call.1} parent=0 // pred_region
    _
  $region25: #{tpu_custom_call.1} parent=0 // pred_fallthru
    _
  // Predicated region
  $region26: #{tpu_custom_call.1} parent=0 // pred_check
    _
  $region27: #{tpu_custom_call.1} parent=0 // pred_check_branch
    %26 = sbr.rel (0) target = $region29
  $region28: #{tpu_custom_call.1} parent=0 // pred_region
    _
  $region29: #{tpu_custom_call.1} parent=0 // pred_fallthru
    _
  // Predicated region
  $region30: #{tpu_custom_call.1} parent=0 // pred_check
    _
  $region31: #{tpu_custom_call.1} parent=0 // pred_check_branch
    %28 = sbr.rel (0) target = $region33
  $region32: #{tpu_custom_call.1} parent=0 // pred_region
    _
  $region33: #{tpu_custom_call.1} parent=0 // pred_fallthru
    _
  %v30 = vld [vmem:[%s0] sm:$0xff]
  %v31 = vld [vmem:[%s0 + $0x8] sm:$0xff]
  %v32 = vld [vmem:[%s0 + $0x10] sm:$0xff]
  %v33 = vld [vmem:[%s0 + $0x18] sm:$0xff]
  %v34 = vld [vmem:[%s0 + $0x20] sm:$0xff]
  %v35 = vld [vmem:[%s0 + $0x28] sm:$0xff]
  %v36 = vld [vmem:[%s0 + $0x30] sm:$0xff]
  %v37 = vld [vmem:[%s0 + $0x38] sm:$0xff]
  %v38 = vld [vmem:[%s0 + $0x40] sm:$0xff]
  %v39 = vld [vmem:[%s0 + $0x48] sm:$0xff]
  %v40 = vld [vmem:[%s0 + $0x50] sm:$0xff]
  %v41 = vld [vmem:[%s0 + $0x58] sm:$0xff]
  %v42 = vld [vmem:[%s2] sm:$0x1]
  %v43 = vld [vmem:[%s2 + $0x1] sm:$0x1]
  %v44 = vlaneseq
  %v45 = vshrl.u32 %v44, 7
  %v46 = vsub.s32 0, %v45
  %v47 = vrot.slane %v43, %v46
  %49 = vrot.lane.b32.xlu0 %v47, 2
  %v50 = vpop.permute.xlu0 %49
  %v52 = vmul.f32 %v30, %v50
  %v53 = vmul.f32 %v31, %v50
  %v54 = vmul.f32 %v32, %v50
  %v55 = vmul.f32 %v33, %v50
  %v56 = vmul.f32 %v34, %v50
  %v57 = vmul.f32 %v35, %v50
  %v58 = vmul.f32 %v36, %v50
  %v59 = vmul.f32 %v37, %v50
  %v60 = vmul.f32 %v38, %v50
  %v61 = vmul.f32 %v39, %v50
  %v62 = vmul.f32 %v40, %v50
  %v63 = vmul.f32 %v41, %v50
  %v64 = vlaneseq
  %v65 = vshrl.u32 %v64, 7
  %v66 = vsub.s32 0, %v65
  %v67 = vrot.slane %v42, %v66
  %69 = vrot.lane.b32.xlu0 %v67, 2
  %v70 = vpop.permute.xlu0 %69
  %v72 = vadd.f32 %v52, %v70
  %v73 = vadd.f32 %v53, %v70
  %v74 = vadd.f32 %v54, %v70
  %v75 = vadd.f32 %v55, %v70
  %v76 = vadd.f32 %v56, %v70
  %v77 = vadd.f32 %v57, %v70
  %v78 = vadd.f32 %v58, %v70
  %v79 = vadd.f32 %v59, %v70
  %v80 = vadd.f32 %v60, %v70
  %v81 = vadd.f32 %v61, %v70
  %v82 = vadd.f32 %v62, %v70
  %v83 = vadd.f32 %v63, %v70
  %v84 = vld [vmem:[%s1] sm:$0xff]
  %v85 = vld [vmem:[%s1 + $0x8] sm:$0xff]
  %v86 = vld [vmem:[%s1 + $0x10] sm:$0xff]
  %v87 = vld [vmem:[%s1 + $0x18] sm:$0xff]
  %v88 = vld [vmem:[%s1 + $0x20] sm:$0xff]
  %v89 = vld [vmem:[%s1 + $0x28] sm:$0xff]
  %v90 = vld [vmem:[%s1 + $0x30] sm:$0xff]
  %v91 = vld [vmem:[%s1 + $0x38] sm:$0xff]
  %v92 = vld [vmem:[%s1 + $0x40] sm:$0xff]
  %v93 = vld [vmem:[%s1 + $0x48] sm:$0xff]
  %v94 = vld [vmem:[%s1 + $0x50] sm:$0xff]
  %v95 = vld [vmem:[%s1 + $0x58] sm:$0xff]
  %108 = vrot.lane.b32.xlu0 %v72, 125
  %v109 = vpop.permute.xlu0 %108
  %110 = vrot.lane.b32.xlu0 %v73, 125
  %v111 = vpop.permute.xlu0 %110
  %112 = vrot.lane.b32.xlu0 %v74, 125
  %v113 = vpop.permute.xlu0 %112
  %114 = vrot.lane.b32.xlu0 %v75, 125
  %v115 = vpop.permute.xlu0 %114
  %116 = vrot.lane.b32.xlu0 %v76, 125
  %v117 = vpop.permute.xlu0 %116
  %118 = vrot.lane.b32.xlu0 %v77, 125
  %v119 = vpop.permute.xlu0 %118
  %120 = vrot.lane.b32.xlu0 %v78, 125
  %v121 = vpop.permute.xlu0 %120
  %122 = vrot.lane.b32.xlu0 %v79, 125
  %v123 = vpop.permute.xlu0 %122
  %124 = vrot.lane.b32.xlu0 %v80, 125
  %v125 = vpop.permute.xlu0 %124
  %126 = vrot.lane.b32.xlu0 %v81, 125
  %v127 = vpop.permute.xlu0 %126
  %128 = vrot.lane.b32.xlu0 %v82, 125
  %v129 = vpop.permute.xlu0 %128
  %130 = vrot.lane.b32.xlu0 %v83, 125
  %v131 = vpop.permute.xlu0 %130
  %v144 = vsub.f32 %v84, %v109
  %v145 = vsub.f32 %v85, %v111
  %v146 = vsub.f32 %v86, %v113
  %v147 = vsub.f32 %v87, %v115
  %v148 = vsub.f32 %v88, %v117
  %v149 = vsub.f32 %v89, %v119
  %v150 = vsub.f32 %v90, %v121
  %v151 = vsub.f32 %v91, %v123
  %v152 = vsub.f32 %v92, %v125
  %v153 = vsub.f32 %v93, %v127
  %v154 = vsub.f32 %v94, %v129
  %v155 = vsub.f32 %v95, %v131
  %v156 = vand.u32 2147483647, %v144
  %v157 = vand.u32 2147483647, %v145
  %v158 = vand.u32 2147483647, %v146
  %v159 = vand.u32 2147483647, %v147
  %v160 = vand.u32 2147483647, %v148
  %v161 = vand.u32 2147483647, %v149
  %v162 = vand.u32 2147483647, %v150
  %v163 = vand.u32 2147483647, %v151
  %v164 = vand.u32 2147483647, %v152
  %v165 = vand.u32 2147483647, %v153
  %v166 = vand.u32 2147483647, %v154
  %v167 = vand.u32 2147483647, %v155
  %v168 = vmul.f32 %v156, 22.5
  %v169 = vmul.f32 %v157, 22.5
  %v170 = vmul.f32 %v158, 22.5
  %v171 = vmul.f32 %v159, 22.5
  %v172 = vmul.f32 %v160, 22.5
  %v173 = vmul.f32 %v161, 22.5
  %v174 = vmul.f32 %v162, 22.5
  %v175 = vmul.f32 %v163, 22.5
  %v176 = vmul.f32 %v164, 22.5
  %v177 = vmul.f32 %v165, 22.5
  %v178 = vmul.f32 %v166, 22.5
  %v179 = vmul.f32 %v167, 22.5
  %v180 = vand.u32 2147483647, %v168
  %vm181 = vcmp.le.f32.partialorder %v180, 0.7853982
  %vm182 = vcmp.lt.s32.totalorder %v168, 0
  %v183 = vand.u32 %v168, 2139095040
  %v184 = vshrl.u32 %v183, 23
  %v185 = vsub.s32 %v184, 127
  %v186 = vand.u32 2147483647, %v168
  %v187 = vand.u32 %v186, 8388607
  %v188 = vor.u32 %v187, 8388608
  %v189 = vsub.s32 0, %v188
  %v190 = vadd.s32 %v185, 1
  %vm191 = vcmp.gt.s32.totalorder %v190, 0
  %v192 = vsel %vm191, %v190, 0
  %v193 = vshrl.u32 %v192, 5
  %v194 = vand.u32 %v192, 31
  %v195 = vsub.s32 32, %v194
  %v196 = vshrl.u32 683565275, %v195
  %v197 = vshll.u32 683565275, %v194
  %v198 = vshrl.u32 2475754826, %v195
  %v199 = vor.u32 %v197, %v198
  %v200 = vshll.u32 2475754826, %v194
  %v201 = vshrl.u32 2131351028, %v195
  %v202 = vor.u32 %v200, %v201
  %v203 = vshll.u32 2131351028, %v194
  %v204 = vshrl.u32 2102212464, %v195
  %v205 = vor.u32 %v203, %v204
  %v206 = vshll.u32 2102212464, %v194
  %v207 = vshrl.u32 920167782, %v195
  %v208 = vor.u32 %v206, %v207
  %v209 = vshll.u32 920167782, %v194
  %v210 = vshrl.u32 1326507024, %v195
  %v211 = vor.u32 %v209, %v210
  %vm212 = vcmp.lt.s32.totalorder %v193, 1
  %vm213 = vcmp.lt.s32.totalorder %v193, 2
  %vm214 = vcmp.lt.s32.totalorder %v193, 3
  %vm215 = vcmp.lt.s32.totalorder %v193, 4
  %v216 = vsel %vm212, %v196, %v199
  %v217 = vsel %vm215, %v205, 2102212464
  %v218 = vsel %vm214, %v202, %v217
  %v219 = vsel %vm213, %v216, %v218
  %v220 = vsel %vm212, %v199, %v202
  %v221 = vsel %vm215, %v208, 920167782
  %v222 = vsel %vm214, %v205, %v221
  %v223 = vsel %vm213, %v220, %v222
  %v224 = vsel %vm212, %v202, %v205
  %v225 = vsel %vm215, %v211, 1326507024
  %v226 = vsel %vm214, %v208, %v225
  %v227 = vsel %vm213, %v224, %v226
  %v228 = vshll.u32 %v188, 8
  %v229 = vmul.u32.u64.compose %v228, %v227
  %v230 = vextract.low.u32 %v229
  %v231 = vextract.high.u32 %v229
  %v232 = vmul.u32.u64.compose %v228, %v223
  %v233 = vextract.low.u32 %v232
  %v234 = vextract.high.u32 %v232
  %v235 = vmul.u32 %v228, %v219
  %v236 = vadd.s32 %v231, %v233
  %vm237 = vc.u32 %v231, %v233
  %v238 = vadd.s32 %v234, 1
  %v239 = vsel %vm237, %v238, %v234
  %v240 = vadd.s32 %v235, %v239
  %v241 = vadd.s32 %v240, 536870912
  %v242 = vshrl.u32 %v241, 30
  %v243 = vshll.u32 %v242, 30
  %v244 = vsub.s32 %v240, %v243
  %vm245 = vcmp.lt.s32.totalorder %v244, 0
  %v246 = vsub.s32 0, %v244
  %v247 = vsel %vm245, %v246, %v244
  %v248 = vclz %v247
  %v249 = vsub.s32 %v248, 2
  %vm250 = vcmp.gt.s32.totalorder 0, %v249
  %v251 = vsel %vm250, 0, %v249
  %v252 = vsub.s32 32, %v251
  %v253 = vshll.u32 %v244, %v251
  %v254 = vshrl.u32 %v236, %v252
  %v255 = vor.u32 %v253, %v254
  %v256 = vsub.s32 4294967266, %v251
  %v257 = vadd.s32 %v256, 127
  %v258 = vshll.u32 %v257, 23
  %v259 = vor.u32 4788187, %v258
  %v260 = vand.u32 2147483647, %v259
  %v262 = vcvt.s32.f32 %v255
  %v263 = vmul.f32 %v262, %v260
  %v264 = vxor.u32 %v263, 2147483648
  %v265 = vsel %vm182, %v264, %v263
  %v266 = vsub.s32 4, %v242
  %v267 = vsel %vm182, %v266, %v242
  %v268 = vsel %vm181, %v168, %v265
  %v269 = vsel %vm181, 0, %v267
  %v270 = vcosq.f32.pop %v268
  %v271 = vsinq.f32.pop %v268
  %vm272 = vweird.f32 %v168
  %v273 = vand.u32 %v269, 3
  %vm274 = vcmp.lt.s32.totalorder %v273, 2
  %vm275 = vcmp.eq.s32.totalorder %v273, 0
  %v276 = vxor.u32 %v271, 2147483648
  %v277 = vsel %vm275, %v270, %v276
  %vm278 = vcmp.eq.s32.totalorder %v273, 2
  %v279 = vxor.u32 %v270, 2147483648
  %v280 = vsel %vm278, %v279, %v271
  %v281 = vsel %vm274, %v277, %v280
  %v282 = vsel %vm272, nan, %v281
  %v283 = vand.u32 2147483647, %v169
  %vm284 = vcmp.le.f32.partialorder %v283, 0.7853982
  %vm285 = vcmp.lt.s32.totalorder %v169, 0
  %v286 = vand.u32 %v169, 2139095040
  %v287 = vshrl.u32 %v286, 23
  %v288 = vsub.s32 %v287, 127
  %v289 = vand.u32 2147483647, %v169
  %v290 = vand.u32 %v289, 8388607
  %v291 = vor.u32 %v290, 8388608
  %v292 = vsub.s32 0, %v291
  %v293 = vadd.s32 %v288, 1
  %vm294 = vcmp.gt.s32.totalorder %v293, 0
  %v295 = vsel %vm294, %v293, 0
  %v296 = vshrl.u32 %v295, 5
  %v297 = vand.u32 %v295, 31
  %v298 = vsub.s32 32, %v297
  %v299 = vshrl.u32 683565275, %v298
  %v300 = vshll.u32 683565275, %v297
  %v301 = vshrl.u32 2475754826, %v298
  %v302 = vor.u32 %v300, %v301
  %v303 = vshll.u32 2475754826, %v297
  %v304 = vshrl.u32 2131351028, %v298
  %v305 = vor.u32 %v303, %v304
  %v306 = vshll.u32 2131351028, %v297
  %v307 = vshrl.u32 2102212464, %v298
  %v308 = vor.u32 %v306, %v307
  %v309 = vshll.u32 2102212464, %v297
  %v310 = vshrl.u32 920167782, %v298
  %v311 = vor.u32 %v309, %v310
  %v312 = vshll.u32 920167782, %v297
  %v313 = vshrl.u32 1326507024, %v298
  %v314 = vor.u32 %v312, %v313
  %vm315 = vcmp.lt.s32.totalorder %v296, 1
  %vm316 = vcmp.lt.s32.totalorder %v296, 2
  %vm317 = vcmp.lt.s32.totalorder %v296, 3
  %vm318 = vcmp.lt.s32.totalorder %v296, 4
  %v319 = vsel %vm315, %v299, %v302
  %v320 = vsel %vm318, %v308, 2102212464
  %v321 = vsel %vm317, %v305, %v320
  %v322 = vsel %vm316, %v319, %v321
  %v323 = vsel %vm315, %v302, %v305
  %v324 = vsel %vm318, %v311, 920167782
  %v325 = vsel %vm317, %v308, %v324
  %v326 = vsel %vm316, %v323, %v325
  %v327 = vsel %vm315, %v305, %v308
  %v328 = vsel %vm318, %v314, 1326507024
  %v329 = vsel %vm317, %v311, %v328
  %v330 = vsel %vm316, %v327, %v329
  %v331 = vshll.u32 %v291, 8
  %v332 = vmul.u32.u64.compose %v331, %v330
  %v333 = vextract.low.u32 %v332
  %v334 = vextract.high.u32 %v332
  %v335 = vmul.u32.u64.compose %v331, %v326
  %v336 = vextract.low.u32 %v335
  %v337 = vextract.high.u32 %v335
  %v338 = vmul.u32 %v331, %v322
  %v339 = vadd.s32 %v334, %v336
  %vm340 = vc.u32 %v334, %v336
  %v341 = vadd.s32 %v337, 1
  %v342 = vsel %vm340, %v341, %v337
  %v343 = vadd.s32 %v338, %v342
  %v344 = vadd.s32 %v343, 536870912
  %v345 = vshrl.u32 %v344, 30
  %v346 = vshll.u32 %v345, 30
  %v347 = vsub.s32 %v343, %v346
  %vm348 = vcmp.lt.s32.totalorder %v347, 0
  %v349 = vsub.s32 0, %v347
  %v350 = vsel %vm348, %v349, %v347
  %v351 = vclz %v350
  %v352 = vsub.s32 %v351, 2
  %vm353 = vcmp.gt.s32.totalorder 0, %v352
  %v354 = vsel %vm353, 0, %v352
  %v355 = vsub.s32 32, %v354
  %v356 = vshll.u32 %v347, %v354
  %v357 = vshrl.u32 %v339, %v355
  %v358 = vor.u32 %v356, %v357
  %v359 = vsub.s32 4294967266, %v354
  %v360 = vadd.s32 %v359, 127
  %v361 = vshll.u32 %v360, 23
  %v362 = vor.u32 4788187, %v361
  %v363 = vand.u32 2147483647, %v362
  %v365 = vcvt.s32.f32 %v358
  %v366 = vmul.f32 %v365, %v363
  %v367 = vxor.u32 %v366, 2147483648
  %v368 = vsel %vm285, %v367, %v366
  %v369 = vsub.s32 4, %v345
  %v370 = vsel %vm285, %v369, %v345
  %v371 = vsel %vm284, %v169, %v368
  %v372 = vsel %vm284, 0, %v370
  %v373 = vcosq.f32.pop %v371
  %v374 = vsinq.f32.pop %v371
  %vm375 = vweird.f32 %v169
  %v376 = vand.u32 %v372, 3
  %vm377 = vcmp.lt.s32.totalorder %v376, 2
  %vm378 = vcmp.eq.s32.totalorder %v376, 0
  %v379 = vxor.u32 %v374, 2147483648
  %v380 = vsel %vm378, %v373, %v379
  %vm381 = vcmp.eq.s32.totalorder %v376, 2
  %v382 = vxor.u32 %v373, 2147483648
  %v383 = vsel %vm381, %v382, %v374
  %v384 = vsel %vm377, %v380, %v383
  %v385 = vsel %vm375, nan, %v384
  %v386 = vand.u32 2147483647, %v170
  %vm387 = vcmp.le.f32.partialorder %v386, 0.7853982
  %vm388 = vcmp.lt.s32.totalorder %v170, 0
  %v389 = vand.u32 %v170, 2139095040
  %v390 = vshrl.u32 %v389, 23
  %v391 = vsub.s32 %v390, 127
  %v392 = vand.u32 2147483647, %v170
  %v393 = vand.u32 %v392, 8388607
  %v394 = vor.u32 %v393, 8388608
  %v395 = vsub.s32 0, %v394
  %v396 = vadd.s32 %v391, 1
  %vm397 = vcmp.gt.s32.totalorder %v396, 0
  %v398 = vsel %vm397, %v396, 0
  %v399 = vshrl.u32 %v398, 5
  %v400 = vand.u32 %v398, 31
  %v401 = vsub.s32 32, %v400
  %v402 = vshrl.u32 683565275, %v401
  %v403 = vshll.u32 683565275, %v400
  %v404 = vshrl.u32 2475754826, %v401
  %v405 = vor.u32 %v403, %v404
  %v406 = vshll.u32 2475754826, %v400
  %v407 = vshrl.u32 2131351028, %v401
  %v408 = vor.u32 %v406, %v407
  %v409 = vshll.u32 2131351028, %v400
  %v410 = vshrl.u32 2102212464, %v401
  %v411 = vor.u32 %v409, %v410
  %v412 = vshll.u32 2102212464, %v400
  %v413 = vshrl.u32 920167782, %v401
  %v414 = vor.u32 %v412, %v413
  %v415 = vshll.u32 920167782, %v400
  %v416 = vshrl.u32 1326507024, %v401
  %v417 = vor.u32 %v415, %v416
  %vm418 = vcmp.lt.s32.totalorder %v399, 1
  %vm419 = vcmp.lt.s32.totalorder %v399, 2
  %vm420 = vcmp.lt.s32.totalorder %v399, 3
  %vm421 = vcmp.lt.s32.totalorder %v399, 4
  %v422 = vsel %vm418, %v402, %v405
  %v423 = vsel %vm421, %v411, 2102212464
  %v424 = vsel %vm420, %v408, %v423
  %v425 = vsel %vm419, %v422, %v424
  %v426 = vsel %vm418, %v405, %v408
  %v427 = vsel %vm421, %v414, 920167782
  %v428 = vsel %vm420, %v411, %v427
  %v429 = vsel %vm419, %v426, %v428
  %v430 = vsel %vm418, %v408, %v411
  %v431 = vsel %vm421, %v417, 1326507024
  %v432 = vsel %vm420, %v414, %v431
  %v433 = vsel %vm419, %v430, %v432
  %v434 = vshll.u32 %v394, 8
  %v435 = vmul.u32.u64.compose %v434, %v433
  %v436 = vextract.low.u32 %v435
  %v437 = vextract.high.u32 %v435
  %v438 = vmul.u32.u64.compose %v434, %v429
  %v439 = vextract.low.u32 %v438
  %v440 = vextract.high.u32 %v438
  %v441 = vmul.u32 %v434, %v425
  %v442 = vadd.s32 %v437, %v439
  %vm443 = vc.u32 %v437, %v439
  %v444 = vadd.s32 %v440, 1
  %v445 = vsel %vm443, %v444, %v440
  %v446 = vadd.s32 %v441, %v445
  %v447 = vadd.s32 %v446, 536870912
  %v448 = vshrl.u32 %v447, 30
  %v449 = vshll.u32 %v448, 30
  %v450 = vsub.s32 %v446, %v449
  %vm451 = vcmp.lt.s32.totalorder %v450, 0
  %v452 = vsub.s32 0, %v450
  %v453 = vsel %vm451, %v452, %v450
  %v454 = vclz %v453
  %v455 = vsub.s32 %v454, 2
  %vm456 = vcmp.gt.s32.totalorder 0, %v455
  %v457 = vsel %vm456, 0, %v455
  %v458 = vsub.s32 32, %v457
  %v459 = vshll.u32 %v450, %v457
  %v460 = vshrl.u32 %v442, %v458
  %v461 = vor.u32 %v459, %v460
  %v462 = vsub.s32 4294967266, %v457
  %v463 = vadd.s32 %v462, 127
  %v464 = vshll.u32 %v463, 23
  %v465 = vor.u32 4788187, %v464
  %v466 = vand.u32 2147483647, %v465
  %v468 = vcvt.s32.f32 %v461
  %v469 = vmul.f32 %v468, %v466
  %v470 = vxor.u32 %v469, 2147483648
  %v471 = vsel %vm388, %v470, %v469
  %v472 = vsub.s32 4, %v448
  %v473 = vsel %vm388, %v472, %v448
  %v474 = vsel %vm387, %v170, %v471
  %v475 = vsel %vm387, 0, %v473
  %v476 = vcosq.f32.pop %v474
  %v477 = vsinq.f32.pop %v474
  %vm478 = vweird.f32 %v170
  %v479 = vand.u32 %v475, 3
  %vm480 = vcmp.lt.s32.totalorder %v479, 2
  %vm481 = vcmp.eq.s32.totalorder %v479, 0
  %v482 = vxor.u32 %v477, 2147483648
  %v483 = vsel %vm481, %v476, %v482
  %vm484 = vcmp.eq.s32.totalorder %v479, 2
  %v485 = vxor.u32 %v476, 2147483648
  %v486 = vsel %vm484, %v485, %v477
  %v487 = vsel %vm480, %v483, %v486
  %v488 = vsel %vm478, nan, %v487
  %v489 = vand.u32 2147483647, %v171
  %vm490 = vcmp.le.f32.partialorder %v489, 0.7853982
  %vm491 = vcmp.lt.s32.totalorder %v171, 0
  %v492 = vand.u32 %v171, 2139095040
  %v493 = vshrl.u32 %v492, 23
  %v494 = vsub.s32 %v493, 127
  %v495 = vand.u32 2147483647, %v171
  %v496 = vand.u32 %v495, 8388607
  %v497 = vor.u32 %v496, 8388608
  %v498 = vsub.s32 0, %v497
  %v499 = vadd.s32 %v494, 1
  %vm500 = vcmp.gt.s32.totalorder %v499, 0
  %v501 = vsel %vm500, %v499, 0
  %v502 = vshrl.u32 %v501, 5
  %v503 = vand.u32 %v501, 31
  %v504 = vsub.s32 32, %v503
  %v505 = vshrl.u32 683565275, %v504
  %v506 = vshll.u32 683565275, %v503
  %v507 = vshrl.u32 2475754826, %v504
  %v508 = vor.u32 %v506, %v507
  %v509 = vshll.u32 2475754826, %v503
  %v510 = vshrl.u32 2131351028, %v504
  %v511 = vor.u32 %v509, %v510
  %v512 = vshll.u32 2131351028, %v503
  %v513 = vshrl.u32 2102212464, %v504
  %v514 = vor.u32 %v512, %v513
  %v515 = vshll.u32 2102212464, %v503
  %v516 = vshrl.u32 920167782, %v504
  %v517 = vor.u32 %v515, %v516
  %v518 = vshll.u32 920167782, %v503
  %v519 = vshrl.u32 1326507024, %v504
  %v520 = vor.u32 %v518, %v519
  %vm521 = vcmp.lt.s32.totalorder %v502, 1
  %vm522 = vcmp.lt.s32.totalorder %v502, 2
  %vm523 = vcmp.lt.s32.totalorder %v502, 3
  %vm524 = vcmp.lt.s32.totalorder %v502, 4
  %v525 = vsel %vm521, %v505, %v508
  %v526 = vsel %vm524, %v514, 2102212464
  %v527 = vsel %vm523, %v511, %v526
  %v528 = vsel %vm522, %v525, %v527
  %v529 = vsel %vm521, %v508, %v511
  %v530 = vsel %vm524, %v517, 920167782
  %v531 = vsel %vm523, %v514, %v530
  %v532 = vsel %vm522, %v529, %v531
  %v533 = vsel %vm521, %v511, %v514
  %v534 = vsel %vm524, %v520, 1326507024
  %v535 = vsel %vm523, %v517, %v534
  %v536 = vsel %vm522, %v533, %v535
  %v537 = vshll.u32 %v497, 8
  %v538 = vmul.u32.u64.compose %v537, %v536
  %v539 = vextract.low.u32 %v538
  %v540 = vextract.high.u32 %v538
  %v541 = vmul.u32.u64.compose %v537, %v532
  %v542 = vextract.low.u32 %v541
  %v543 = vextract.high.u32 %v541
  %v544 = vmul.u32 %v537, %v528
  %v545 = vadd.s32 %v540, %v542
  %vm546 = vc.u32 %v540, %v542
  %v547 = vadd.s32 %v543, 1
  %v548 = vsel %vm546, %v547, %v543
  %v549 = vadd.s32 %v544, %v548
  %v550 = vadd.s32 %v549, 536870912
  %v551 = vshrl.u32 %v550, 30
  %v552 = vshll.u32 %v551, 30
  %v553 = vsub.s32 %v549, %v552
  %vm554 = vcmp.lt.s32.totalorder %v553, 0
  %v555 = vsub.s32 0, %v553
  %v556 = vsel %vm554, %v555, %v553
  %v557 = vclz %v556
  %v558 = vsub.s32 %v557, 2
  %vm559 = vcmp.gt.s32.totalorder 0, %v558
  %v560 = vsel %vm559, 0, %v558
  %v561 = vsub.s32 32, %v560
  %v562 = vshll.u32 %v553, %v560
  %v563 = vshrl.u32 %v545, %v561
  %v564 = vor.u32 %v562, %v563
  %v565 = vsub.s32 4294967266, %v560
  %v566 = vadd.s32 %v565, 127
  %v567 = vshll.u32 %v566, 23
  %v568 = vor.u32 4788187, %v567
  %v569 = vand.u32 2147483647, %v568
  %v571 = vcvt.s32.f32 %v564
  %v572 = vmul.f32 %v571, %v569
  %v573 = vxor.u32 %v572, 2147483648
  %v574 = vsel %vm491, %v573, %v572
  %v575 = vsub.s32 4, %v551
  %v576 = vsel %vm491, %v575, %v551
  %v577 = vsel %vm490, %v171, %v574
  %v578 = vsel %vm490, 0, %v576
  %v579 = vcosq.f32.pop %v577
  %v580 = vsinq.f32.pop %v577
  %vm581 = vweird.f32 %v171
  %v582 = vand.u32 %v578, 3
  %vm583 = vcmp.lt.s32.totalorder %v582, 2
  %vm584 = vcmp.eq.s32.totalorder %v582, 0
  %v585 = vxor.u32 %v580, 2147483648
  %v586 = vsel %vm584, %v579, %v585
  %vm587 = vcmp.eq.s32.totalorder %v582, 2
  %v588 = vxor.u32 %v579, 2147483648
  %v589 = vsel %vm587, %v588, %v580
  %v590 = vsel %vm583, %v586, %v589
  %v591 = vsel %vm581, nan, %v590
  %v592 = vand.u32 2147483647, %v172
  %vm593 = vcmp.le.f32.partialorder %v592, 0.7853982
  %vm594 = vcmp.lt.s32.totalorder %v172, 0
  %v595 = vand.u32 %v172, 2139095040
  %v596 = vshrl.u32 %v595, 23
  %v597 = vsub.s32 %v596, 127
  %v598 = vand.u32 2147483647, %v172
  %v599 = vand.u32 %v598, 8388607
  %v600 = vor.u32 %v599, 8388608
  %v601 = vsub.s32 0, %v600
  %v602 = vadd.s32 %v597, 1
  %vm603 = vcmp.gt.s32.totalorder %v602, 0
  %v604 = vsel %vm603, %v602, 0
  %v605 = vshrl.u32 %v604, 5
  %v606 = vand.u32 %v604, 31
  %v607 = vsub.s32 32, %v606
  %v608 = vshrl.u32 683565275, %v607
  %v609 = vshll.u32 683565275, %v606
  %v610 = vshrl.u32 2475754826, %v607
  %v611 = vor.u32 %v609, %v610
  %v612 = vshll.u32 2475754826, %v606
  %v613 = vshrl.u32 2131351028, %v607
  %v614 = vor.u32 %v612, %v613
  %v615 = vshll.u32 2131351028, %v606
  %v616 = vshrl.u32 2102212464, %v607
  %v617 = vor.u32 %v615, %v616
  %v618 = vshll.u32 2102212464, %v606
  %v619 = vshrl.u32 920167782, %v607
  %v620 = vor.u32 %v618, %v619
  %v621 = vshll.u32 920167782, %v606
  %v622 = vshrl.u32 1326507024, %v607
  %v623 = vor.u32 %v621, %v622
  %vm624 = vcmp.lt.s32.totalorder %v605, 1
  %vm625 = vcmp.lt.s32.totalorder %v605, 2
  %vm626 = vcmp.lt.s32.totalorder %v605, 3
  %vm627 = vcmp.lt.s32.totalorder %v605, 4
  %v628 = vsel %vm624, %v608, %v611
  %v629 = vsel %vm627, %v617, 2102212464
  %v630 = vsel %vm626, %v614, %v629
  %v631 = vsel %vm625, %v628, %v630
  %v632 = vsel %vm624, %v611, %v614
  %v633 = vsel %vm627, %v620, 920167782
  %v634 = vsel %vm626, %v617, %v633
  %v635 = vsel %vm625, %v632, %v634
  %v636 = vsel %vm624, %v614, %v617
  %v637 = vsel %vm627, %v623, 1326507024
  %v638 = vsel %vm626, %v620, %v637
  %v639 = vsel %vm625, %v636, %v638
  %v640 = vshll.u32 %v600, 8
  %v641 = vmul.u32.u64.compose %v640, %v639
  %v642 = vextract.low.u32 %v641
  %v643 = vextract.high.u32 %v641
  %v644 = vmul.u32.u64.compose %v640, %v635
  %v645 = vextract.low.u32 %v644
  %v646 = vextract.high.u32 %v644
  %v647 = vmul.u32 %v640, %v631
  %v648 = vadd.s32 %v643, %v645
  %vm649 = vc.u32 %v643, %v645
  %v650 = vadd.s32 %v646, 1
  %v651 = vsel %vm649, %v650, %v646
  %v652 = vadd.s32 %v647, %v651
  %v653 = vadd.s32 %v652, 536870912
  %v654 = vshrl.u32 %v653, 30
  %v655 = vshll.u32 %v654, 30
  %v656 = vsub.s32 %v652, %v655
  %vm657 = vcmp.lt.s32.totalorder %v656, 0
  %v658 = vsub.s32 0, %v656
  %v659 = vsel %vm657, %v658, %v656
  %v660 = vclz %v659
  %v661 = vsub.s32 %v660, 2
  %vm662 = vcmp.gt.s32.totalorder 0, %v661
  %v663 = vsel %vm662, 0, %v661
  %v664 = vsub.s32 32, %v663
  %v665 = vshll.u32 %v656, %v663
  %v666 = vshrl.u32 %v648, %v664
  %v667 = vor.u32 %v665, %v666
  %v668 = vsub.s32 4294967266, %v663
  %v669 = vadd.s32 %v668, 127
  %v670 = vshll.u32 %v669, 23
  %v671 = vor.u32 4788187, %v670
  %v672 = vand.u32 2147483647, %v671
  %v674 = vcvt.s32.f32 %v667
  %v675 = vmul.f32 %v674, %v672
  %v676 = vxor.u32 %v675, 2147483648
  %v677 = vsel %vm594, %v676, %v675
  %v678 = vsub.s32 4, %v654
  %v679 = vsel %vm594, %v678, %v654
  %v680 = vsel %vm593, %v172, %v677
  %v681 = vsel %vm593, 0, %v679
  %v682 = vcosq.f32.pop %v680
  %v683 = vsinq.f32.pop %v680
  %vm684 = vweird.f32 %v172
  %v685 = vand.u32 %v681, 3
  %vm686 = vcmp.lt.s32.totalorder %v685, 2
  %vm687 = vcmp.eq.s32.totalorder %v685, 0
  %v688 = vxor.u32 %v683, 2147483648
  %v689 = vsel %vm687, %v682, %v688
  %vm690 = vcmp.eq.s32.totalorder %v685, 2
  %v691 = vxor.u32 %v682, 2147483648
  %v692 = vsel %vm690, %v691, %v683
  %v693 = vsel %vm686, %v689, %v692
  %v694 = vsel %vm684, nan, %v693
  %v695 = vand.u32 2147483647, %v173
  %vm696 = vcmp.le.f32.partialorder %v695, 0.7853982
  %vm697 = vcmp.lt.s32.totalorder %v173, 0
  %v698 = vand.u32 %v173, 2139095040
  %v699 = vshrl.u32 %v698, 23
  %v700 = vsub.s32 %v699, 127
  %v701 = vand.u32 2147483647, %v173
  %v702 = vand.u32 %v701, 8388607
  %v703 = vor.u32 %v702, 8388608
  %v704 = vsub.s32 0, %v703
  %v705 = vadd.s32 %v700, 1
  %vm706 = vcmp.gt.s32.totalorder %v705, 0
  %v707 = vsel %vm706, %v705, 0
  %v708 = vshrl.u32 %v707, 5
  %v709 = vand.u32 %v707, 31
  %v710 = vsub.s32 32, %v709
  %v711 = vshrl.u32 683565275, %v710
  %v712 = vshll.u32 683565275, %v709
  %v713 = vshrl.u32 2475754826, %v710
  %v714 = vor.u32 %v712, %v713
  %v715 = vshll.u32 2475754826, %v709
  %v716 = vshrl.u32 2131351028, %v710
  %v717 = vor.u32 %v715, %v716
  %v718 = vshll.u32 2131351028, %v709
  %v719 = vshrl.u32 2102212464, %v710
  %v720 = vor.u32 %v718, %v719
  %v721 = vshll.u32 2102212464, %v709
  %v722 = vshrl.u32 920167782, %v710
  %v723 = vor.u32 %v721, %v722
  %v724 = vshll.u32 920167782, %v709
  %v725 = vshrl.u32 1326507024, %v710
  %v726 = vor.u32 %v724, %v725
  %vm727 = vcmp.lt.s32.totalorder %v708, 1
  %vm728 = vcmp.lt.s32.totalorder %v708, 2
  %vm729 = vcmp.lt.s32.totalorder %v708, 3
  %vm730 = vcmp.lt.s32.totalorder %v708, 4
  %v731 = vsel %vm727, %v711, %v714
  %v732 = vsel %vm730, %v720, 2102212464
  %v733 = vsel %vm729, %v717, %v732
  %v734 = vsel %vm728, %v731, %v733
  %v735 = vsel %vm727, %v714, %v717
  %v736 = vsel %vm730, %v723, 920167782
  %v737 = vsel %vm729, %v720, %v736
  %v738 = vsel %vm728, %v735, %v737
  %v739 = vsel %vm727, %v717, %v720
  %v740 = vsel %vm730, %v726, 1326507024
  %v741 = vsel %vm729, %v723, %v740
  %v742 = vsel %vm728, %v739, %v741
  %v743 = vshll.u32 %v703, 8
  %v744 = vmul.u32.u64.compose %v743, %v742
  %v745 = vextract.low.u32 %v744
  %v746 = vextract.high.u32 %v744
  %v747 = vmul.u32.u64.compose %v743, %v738
  %v748 = vextract.low.u32 %v747
  %v749 = vextract.high.u32 %v747
  %v750 = vmul.u32 %v743, %v734
  %v751 = vadd.s32 %v746, %v748
  %vm752 = vc.u32 %v746, %v748
  %v753 = vadd.s32 %v749, 1
  %v754 = vsel %vm752, %v753, %v749
  %v755 = vadd.s32 %v750, %v754
  %v756 = vadd.s32 %v755, 536870912
  %v757 = vshrl.u32 %v756, 30
  %v758 = vshll.u32 %v757, 30
  %v759 = vsub.s32 %v755, %v758
  %vm760 = vcmp.lt.s32.totalorder %v759, 0
  %v761 = vsub.s32 0, %v759
  %v762 = vsel %vm760, %v761, %v759
  %v763 = vclz %v762
  %v764 = vsub.s32 %v763, 2
  %vm765 = vcmp.gt.s32.totalorder 0, %v764
  %v766 = vsel %vm765, 0, %v764
  %v767 = vsub.s32 32, %v766
  %v768 = vshll.u32 %v759, %v766
  %v769 = vshrl.u32 %v751, %v767
  %v770 = vor.u32 %v768, %v769
  %v771 = vsub.s32 4294967266, %v766
  %v772 = vadd.s32 %v771, 127
  %v773 = vshll.u32 %v772, 23
  %v774 = vor.u32 4788187, %v773
  %v775 = vand.u32 2147483647, %v774
  %v777 = vcvt.s32.f32 %v770
  %v778 = vmul.f32 %v777, %v775
  %v779 = vxor.u32 %v778, 2147483648
  %v780 = vsel %vm697, %v779, %v778
  %v781 = vsub.s32 4, %v757
  %v782 = vsel %vm697, %v781, %v757
  %v783 = vsel %vm696, %v173, %v780
  %v784 = vsel %vm696, 0, %v782
  %v785 = vcosq.f32.pop %v783
  %v786 = vsinq.f32.pop %v783
  %vm787 = vweird.f32 %v173
  %v788 = vand.u32 %v784, 3
  %vm789 = vcmp.lt.s32.totalorder %v788, 2
  %vm790 = vcmp.eq.s32.totalorder %v788, 0
  %v791 = vxor.u32 %v786, 2147483648
  %v792 = vsel %vm790, %v785, %v791
  %vm793 = vcmp.eq.s32.totalorder %v788, 2
  %v794 = vxor.u32 %v785, 2147483648
  %v795 = vsel %vm793, %v794, %v786
  %v796 = vsel %vm789, %v792, %v795
  %v797 = vsel %vm787, nan, %v796
  %v798 = vand.u32 2147483647, %v174
  %vm799 = vcmp.le.f32.partialorder %v798, 0.7853982
  %vm800 = vcmp.lt.s32.totalorder %v174, 0
  %v801 = vand.u32 %v174, 2139095040
  %v802 = vshrl.u32 %v801, 23
  %v803 = vsub.s32 %v802, 127
  %v804 = vand.u32 2147483647, %v174
  %v805 = vand.u32 %v804, 8388607
  %v806 = vor.u32 %v805, 8388608
  %v807 = vsub.s32 0, %v806
  %v808 = vadd.s32 %v803, 1
  %vm809 = vcmp.gt.s32.totalorder %v808, 0
  %v810 = vsel %vm809, %v808, 0
  %v811 = vshrl.u32 %v810, 5
  %v812 = vand.u32 %v810, 31
  %v813 = vsub.s32 32, %v812
  %v814 = vshrl.u32 683565275, %v813
  %v815 = vshll.u32 683565275, %v812
  %v816 = vshrl.u32 2475754826, %v813
  %v817 = vor.u32 %v815, %v816
  %v818 = vshll.u32 2475754826, %v812
  %v819 = vshrl.u32 2131351028, %v813
  %v820 = vor.u32 %v818, %v819
  %v821 = vshll.u32 2131351028, %v812
  %v822 = vshrl.u32 2102212464, %v813
  %v823 = vor.u32 %v821, %v822
  %v824 = vshll.u32 2102212464, %v812
  %v825 = vshrl.u32 920167782, %v813
  %v826 = vor.u32 %v824, %v825
  %v827 = vshll.u32 920167782, %v812
  %v828 = vshrl.u32 1326507024, %v813
  %v829 = vor.u32 %v827, %v828
  %vm830 = vcmp.lt.s32.totalorder %v811, 1
  %vm831 = vcmp.lt.s32.totalorder %v811, 2
  %vm832 = vcmp.lt.s32.totalorder %v811, 3
  %vm833 = vcmp.lt.s32.totalorder %v811, 4
  %v834 = vsel %vm830, %v814, %v817
  %v835 = vsel %vm833, %v823, 2102212464
  %v836 = vsel %vm832, %v820, %v835
  %v837 = vsel %vm831, %v834, %v836
  %v838 = vsel %vm830, %v817, %v820
  %v839 = vsel %vm833, %v826, 920167782
  %v840 = vsel %vm832, %v823, %v839
  %v841 = vsel %vm831, %v838, %v840
  %v842 = vsel %vm830, %v820, %v823
  %v843 = vsel %vm833, %v829, 1326507024
  %v844 = vsel %vm832, %v826, %v843
  %v845 = vsel %vm831, %v842, %v844
  %v846 = vshll.u32 %v806, 8
  %v847 = vmul.u32.u64.compose %v846, %v845
  %v848 = vextract.low.u32 %v847
  %v849 = vextract.high.u32 %v847
  %v850 = vmul.u32.u64.compose %v846, %v841
  %v851 = vextract.low.u32 %v850
  %v852 = vextract.high.u32 %v850
  %v853 = vmul.u32 %v846, %v837
  %v854 = vadd.s32 %v849, %v851
  %vm855 = vc.u32 %v849, %v851
  %v856 = vadd.s32 %v852, 1
  %v857 = vsel %vm855, %v856, %v852
  %v858 = vadd.s32 %v853, %v857
  %v859 = vadd.s32 %v858, 536870912
  %v860 = vshrl.u32 %v859, 30
  %v861 = vshll.u32 %v860, 30
  %v862 = vsub.s32 %v858, %v861
  %vm863 = vcmp.lt.s32.totalorder %v862, 0
  %v864 = vsub.s32 0, %v862
  %v865 = vsel %vm863, %v864, %v862
  %v866 = vclz %v865
  %v867 = vsub.s32 %v866, 2
  %vm868 = vcmp.gt.s32.totalorder 0, %v867
  %v869 = vsel %vm868, 0, %v867
  %v870 = vsub.s32 32, %v869
  %v871 = vshll.u32 %v862, %v869
  %v872 = vshrl.u32 %v854, %v870
  %v873 = vor.u32 %v871, %v872
  %v874 = vsub.s32 4294967266, %v869
  %v875 = vadd.s32 %v874, 127
  %v876 = vshll.u32 %v875, 23
  %v877 = vor.u32 4788187, %v876
  %v878 = vand.u32 2147483647, %v877
  %v880 = vcvt.s32.f32 %v873
  %v881 = vmul.f32 %v880, %v878
  %v882 = vxor.u32 %v881, 2147483648
  %v883 = vsel %vm800, %v882, %v881
  %v884 = vsub.s32 4, %v860
  %v885 = vsel %vm800, %v884, %v860
  %v886 = vsel %vm799, %v174, %v883
  %v887 = vsel %vm799, 0, %v885
  %v888 = vcosq.f32.pop %v886
  %v889 = vsinq.f32.pop %v886
  %vm890 = vweird.f32 %v174
  %v891 = vand.u32 %v887, 3
  %vm892 = vcmp.lt.s32.totalorder %v891, 2
  %vm893 = vcmp.eq.s32.totalorder %v891, 0
  %v894 = vxor.u32 %v889, 2147483648
  %v895 = vsel %vm893, %v888, %v894
  %vm896 = vcmp.eq.s32.totalorder %v891, 2
  %v897 = vxor.u32 %v888, 2147483648
  %v898 = vsel %vm896, %v897, %v889
  %v899 = vsel %vm892, %v895, %v898
  %v900 = vsel %vm890, nan, %v899
  %v901 = vand.u32 2147483647, %v175
  %vm902 = vcmp.le.f32.partialorder %v901, 0.7853982
  %vm903 = vcmp.lt.s32.totalorder %v175, 0
  %v904 = vand.u32 %v175, 2139095040
  %v905 = vshrl.u32 %v904, 23
  %v906 = vsub.s32 %v905, 127
  %v907 = vand.u32 2147483647, %v175
  %v908 = vand.u32 %v907, 8388607
  %v909 = vor.u32 %v908, 8388608
  %v910 = vsub.s32 0, %v909
  %v911 = vadd.s32 %v906, 1
  %vm912 = vcmp.gt.s32.totalorder %v911, 0
  %v913 = vsel %vm912, %v911, 0
  %v914 = vshrl.u32 %v913, 5
  %v915 = vand.u32 %v913, 31
  %v916 = vsub.s32 32, %v915
  %v917 = vshrl.u32 683565275, %v916
  %v918 = vshll.u32 683565275, %v915
  %v919 = vshrl.u32 2475754826, %v916
  %v920 = vor.u32 %v918, %v919
  %v921 = vshll.u32 2475754826, %v915
  %v922 = vshrl.u32 2131351028, %v916
  %v923 = vor.u32 %v921, %v922
  %v924 = vshll.u32 2131351028, %v915
  %v925 = vshrl.u32 2102212464, %v916
  %v926 = vor.u32 %v924, %v925
  %v927 = vshll.u32 2102212464, %v915
  %v928 = vshrl.u32 920167782, %v916
  %v929 = vor.u32 %v927, %v928
  %v930 = vshll.u32 920167782, %v915
  %v931 = vshrl.u32 1326507024, %v916
  %v932 = vor.u32 %v930, %v931
  %vm933 = vcmp.lt.s32.totalorder %v914, 1
  %vm934 = vcmp.lt.s32.totalorder %v914, 2
  %vm935 = vcmp.lt.s32.totalorder %v914, 3
  %vm936 = vcmp.lt.s32.totalorder %v914, 4
  %v937 = vsel %vm933, %v917, %v920
  %v938 = vsel %vm936, %v926, 2102212464
  %v939 = vsel %vm935, %v923, %v938
  %v940 = vsel %vm934, %v937, %v939
  %v941 = vsel %vm933, %v920, %v923
  %v942 = vsel %vm936, %v929, 920167782
  %v943 = vsel %vm935, %v926, %v942
  %v944 = vsel %vm934, %v941, %v943
  %v945 = vsel %vm933, %v923, %v926
  %v946 = vsel %vm936, %v932, 1326507024
  %v947 = vsel %vm935, %v929, %v946
  %v948 = vsel %vm934, %v945, %v947
  %v949 = vshll.u32 %v909, 8
  %v950 = vmul.u32.u64.compose %v949, %v948
  %v951 = vextract.low.u32 %v950
  %v952 = vextract.high.u32 %v950
  %v953 = vmul.u32.u64.compose %v949, %v944
  %v954 = vextract.low.u32 %v953
  %v955 = vextract.high.u32 %v953
  %v956 = vmul.u32 %v949, %v940
  %v957 = vadd.s32 %v952, %v954
  %vm958 = vc.u32 %v952, %v954
  %v959 = vadd.s32 %v955, 1
  %v960 = vsel %vm958, %v959, %v955
  %v961 = vadd.s32 %v956, %v960
  %v962 = vadd.s32 %v961, 536870912
  %v963 = vshrl.u32 %v962, 30
  %v964 = vshll.u32 %v963, 30
  %v965 = vsub.s32 %v961, %v964
  %vm966 = vcmp.lt.s32.totalorder %v965, 0
  %v967 = vsub.s32 0, %v965
  %v968 = vsel %vm966, %v967, %v965
  %v969 = vclz %v968
  %v970 = vsub.s32 %v969, 2
  %vm971 = vcmp.gt.s32.totalorder 0, %v970
  %v972 = vsel %vm971, 0, %v970
  %v973 = vsub.s32 32, %v972
  %v974 = vshll.u32 %v965, %v972
  %v975 = vshrl.u32 %v957, %v973
  %v976 = vor.u32 %v974, %v975
  %v977 = vsub.s32 4294967266, %v972
  %v978 = vadd.s32 %v977, 127
  %v979 = vshll.u32 %v978, 23
  %v980 = vor.u32 4788187, %v979
  %v981 = vand.u32 2147483647, %v980
  %v983 = vcvt.s32.f32 %v976
  %v984 = vmul.f32 %v983, %v981
  %v985 = vxor.u32 %v984, 2147483648
  %v986 = vsel %vm903, %v985, %v984
  %v987 = vsub.s32 4, %v963
  %v988 = vsel %vm903, %v987, %v963
  %v989 = vsel %vm902, %v175, %v986
  %v990 = vsel %vm902, 0, %v988
  %v991 = vcosq.f32.pop %v989
  %v992 = vsinq.f32.pop %v989
  %vm993 = vweird.f32 %v175
  %v994 = vand.u32 %v990, 3
  %vm995 = vcmp.lt.s32.totalorder %v994, 2
  %vm996 = vcmp.eq.s32.totalorder %v994, 0
  %v997 = vxor.u32 %v992, 2147483648
  %v998 = vsel %vm996, %v991, %v997
  %vm999 = vcmp.eq.s32.totalorder %v994, 2
  %v1000 = vxor.u32 %v991, 2147483648
  %v1001 = vsel %vm999, %v1000, %v992
  %v1002 = vsel %vm995, %v998, %v1001
  %v1003 = vsel %vm993, nan, %v1002
  %v1004 = vand.u32 2147483647, %v176
  %vm1005 = vcmp.le.f32.partialorder %v1004, 0.7853982
  %vm1006 = vcmp.lt.s32.totalorder %v176, 0
  %v1007 = vand.u32 %v176, 2139095040
  %v1008 = vshrl.u32 %v1007, 23
  %v1009 = vsub.s32 %v1008, 127
  %v1010 = vand.u32 2147483647, %v176
  %v1011 = vand.u32 %v1010, 8388607
  %v1012 = vor.u32 %v1011, 8388608
  %v1013 = vsub.s32 0, %v1012
  %v1014 = vadd.s32 %v1009, 1
  %vm1015 = vcmp.gt.s32.totalorder %v1014, 0
  %v1016 = vsel %vm1015, %v1014, 0
  %v1017 = vshrl.u32 %v1016, 5
  %v1018 = vand.u32 %v1016, 31
  %v1019 = vsub.s32 32, %v1018
  %v1020 = vshrl.u32 683565275, %v1019
  %v1021 = vshll.u32 683565275, %v1018
  %v1022 = vshrl.u32 2475754826, %v1019
  %v1023 = vor.u32 %v1021, %v1022
  %v1024 = vshll.u32 2475754826, %v1018
  %v1025 = vshrl.u32 2131351028, %v1019
  %v1026 = vor.u32 %v1024, %v1025
  %v1027 = vshll.u32 2131351028, %v1018
  %v1028 = vshrl.u32 2102212464, %v1019
  %v1029 = vor.u32 %v1027, %v1028
  %v1030 = vshll.u32 2102212464, %v1018
  %v1031 = vshrl.u32 920167782, %v1019
  %v1032 = vor.u32 %v1030, %v1031
  %v1033 = vshll.u32 920167782, %v1018
  %v1034 = vshrl.u32 1326507024, %v1019
  %v1035 = vor.u32 %v1033, %v1034
  %vm1036 = vcmp.lt.s32.totalorder %v1017, 1
  %vm1037 = vcmp.lt.s32.totalorder %v1017, 2
  %vm1038 = vcmp.lt.s32.totalorder %v1017, 3
  %vm1039 = vcmp.lt.s32.totalorder %v1017, 4
  %v1040 = vsel %vm1036, %v1020, %v1023
  %v1041 = vsel %vm1039, %v1029, 2102212464
  %v1042 = vsel %vm1038, %v1026, %v1041
  %v1043 = vsel %vm1037, %v1040, %v1042
  %v1044 = vsel %vm1036, %v1023, %v1026
  %v1045 = vsel %vm1039, %v1032, 920167782
  %v1046 = vsel %vm1038, %v1029, %v1045
  %v1047 = vsel %vm1037, %v1044, %v1046
  %v1048 = vsel %vm1036, %v1026, %v1029
  %v1049 = vsel %vm1039, %v1035, 1326507024
  %v1050 = vsel %vm1038, %v1032, %v1049
  %v1051 = vsel %vm1037, %v1048, %v1050
  %v1052 = vshll.u32 %v1012, 8
  %v1053 = vmul.u32.u64.compose %v1052, %v1051
  %v1054 = vextract.low.u32 %v1053
  %v1055 = vextract.high.u32 %v1053
  %v1056 = vmul.u32.u64.compose %v1052, %v1047
  %v1057 = vextract.low.u32 %v1056
  %v1058 = vextract.high.u32 %v1056
  %v1059 = vmul.u32 %v1052, %v1043
  %v1060 = vadd.s32 %v1055, %v1057
  %vm1061 = vc.u32 %v1055, %v1057
  %v1062 = vadd.s32 %v1058, 1
  %v1063 = vsel %vm1061, %v1062, %v1058
  %v1064 = vadd.s32 %v1059, %v1063
  %v1065 = vadd.s32 %v1064, 536870912
  %v1066 = vshrl.u32 %v1065, 30
  %v1067 = vshll.u32 %v1066, 30
  %v1068 = vsub.s32 %v1064, %v1067
  %vm1069 = vcmp.lt.s32.totalorder %v1068, 0
  %v1070 = vsub.s32 0, %v1068
  %v1071 = vsel %vm1069, %v1070, %v1068
  %v1072 = vclz %v1071
  %v1073 = vsub.s32 %v1072, 2
  %vm1074 = vcmp.gt.s32.totalorder 0, %v1073
  %v1075 = vsel %vm1074, 0, %v1073
  %v1076 = vsub.s32 32, %v1075
  %v1077 = vshll.u32 %v1068, %v1075
  %v1078 = vshrl.u32 %v1060, %v1076
  %v1079 = vor.u32 %v1077, %v1078
  %v1080 = vsub.s32 4294967266, %v1075
  %v1081 = vadd.s32 %v1080, 127
  %v1082 = vshll.u32 %v1081, 23
  %v1083 = vor.u32 4788187, %v1082
  %v1084 = vand.u32 2147483647, %v1083
  %v1086 = vcvt.s32.f32 %v1079
  %v1087 = vmul.f32 %v1086, %v1084
  %v1088 = vxor.u32 %v1087, 2147483648
  %v1089 = vsel %vm1006, %v1088, %v1087
  %v1090 = vsub.s32 4, %v1066
  %v1091 = vsel %vm1006, %v1090, %v1066
  %v1092 = vsel %vm1005, %v176, %v1089
  %v1093 = vsel %vm1005, 0, %v1091
  %v1094 = vcosq.f32.pop %v1092
  %v1095 = vsinq.f32.pop %v1092
  %vm1096 = vweird.f32 %v176
  %v1097 = vand.u32 %v1093, 3
  %vm1098 = vcmp.lt.s32.totalorder %v1097, 2
  %vm1099 = vcmp.eq.s32.totalorder %v1097, 0
  %v1100 = vxor.u32 %v1095, 2147483648
  %v1101 = vsel %vm1099, %v1094, %v1100
  %vm1102 = vcmp.eq.s32.totalorder %v1097, 2
  %v1103 = vxor.u32 %v1094, 2147483648
  %v1104 = vsel %vm1102, %v1103, %v1095
  %v1105 = vsel %vm1098, %v1101, %v1104
  %v1106 = vsel %vm1096, nan, %v1105
  %v1107 = vand.u32 2147483647, %v177
  %vm1108 = vcmp.le.f32.partialorder %v1107, 0.7853982
  %vm1109 = vcmp.lt.s32.totalorder %v177, 0
  %v1110 = vand.u32 %v177, 2139095040
  %v1111 = vshrl.u32 %v1110, 23
  %v1112 = vsub.s32 %v1111, 127
  %v1113 = vand.u32 2147483647, %v177
  %v1114 = vand.u32 %v1113, 8388607
  %v1115 = vor.u32 %v1114, 8388608
  %v1116 = vsub.s32 0, %v1115
  %v1117 = vadd.s32 %v1112, 1
  %vm1118 = vcmp.gt.s32.totalorder %v1117, 0
  %v1119 = vsel %vm1118, %v1117, 0
  %v1120 = vshrl.u32 %v1119, 5
  %v1121 = vand.u32 %v1119, 31
  %v1122 = vsub.s32 32, %v1121
  %v1123 = vshrl.u32 683565275, %v1122
  %v1124 = vshll.u32 683565275, %v1121
  %v1125 = vshrl.u32 2475754826, %v1122
  %v1126 = vor.u32 %v1124, %v1125
  %v1127 = vshll.u32 2475754826, %v1121
  %v1128 = vshrl.u32 2131351028, %v1122
  %v1129 = vor.u32 %v1127, %v1128
  %v1130 = vshll.u32 2131351028, %v1121
  %v1131 = vshrl.u32 2102212464, %v1122
  %v1132 = vor.u32 %v1130, %v1131
  %v1133 = vshll.u32 2102212464, %v1121
  %v1134 = vshrl.u32 920167782, %v1122
  %v1135 = vor.u32 %v1133, %v1134
  %v1136 = vshll.u32 920167782, %v1121
  %v1137 = vshrl.u32 1326507024, %v1122
  %v1138 = vor.u32 %v1136, %v1137
  %vm1139 = vcmp.lt.s32.totalorder %v1120, 1
  %vm1140 = vcmp.lt.s32.totalorder %v1120, 2
  %vm1141 = vcmp.lt.s32.totalorder %v1120, 3
  %vm1142 = vcmp.lt.s32.totalorder %v1120, 4
  %v1143 = vsel %vm1139, %v1123, %v1126
  %v1144 = vsel %vm1142, %v1132, 2102212464
  %v1145 = vsel %vm1141, %v1129, %v1144
  %v1146 = vsel %vm1140, %v1143, %v1145
  %v1147 = vsel %vm1139, %v1126, %v1129
  %v1148 = vsel %vm1142, %v1135, 920167782
  %v1149 = vsel %vm1141, %v1132, %v1148
  %v1150 = vsel %vm1140, %v1147, %v1149
  %v1151 = vsel %vm1139, %v1129, %v1132
  %v1152 = vsel %vm1142, %v1138, 1326507024
  %v1153 = vsel %vm1141, %v1135, %v1152
  %v1154 = vsel %vm1140, %v1151, %v1153
  %v1155 = vshll.u32 %v1115, 8
  %v1156 = vmul.u32.u64.compose %v1155, %v1154
  %v1157 = vextract.low.u32 %v1156
  %v1158 = vextract.high.u32 %v1156
  %v1159 = vmul.u32.u64.compose %v1155, %v1150
  %v1160 = vextract.low.u32 %v1159
  %v1161 = vextract.high.u32 %v1159
  %v1162 = vmul.u32 %v1155, %v1146
  %v1163 = vadd.s32 %v1158, %v1160
  %vm1164 = vc.u32 %v1158, %v1160
  %v1165 = vadd.s32 %v1161, 1
  %v1166 = vsel %vm1164, %v1165, %v1161
  %v1167 = vadd.s32 %v1162, %v1166
  %v1168 = vadd.s32 %v1167, 536870912
  %v1169 = vshrl.u32 %v1168, 30
  %v1170 = vshll.u32 %v1169, 30
  %v1171 = vsub.s32 %v1167, %v1170
  %vm1172 = vcmp.lt.s32.totalorder %v1171, 0
  %v1173 = vsub.s32 0, %v1171
  %v1174 = vsel %vm1172, %v1173, %v1171
  %v1175 = vclz %v1174
  %v1176 = vsub.s32 %v1175, 2
  %vm1177 = vcmp.gt.s32.totalorder 0, %v1176
  %v1178 = vsel %vm1177, 0, %v1176
  %v1179 = vsub.s32 32, %v1178
  %v1180 = vshll.u32 %v1171, %v1178
  %v1181 = vshrl.u32 %v1163, %v1179
  %v1182 = vor.u32 %v1180, %v1181
  %v1183 = vsub.s32 4294967266, %v1178
  %v1184 = vadd.s32 %v1183, 127
  %v1185 = vshll.u32 %v1184, 23
  %v1186 = vor.u32 4788187, %v1185
  %v1187 = vand.u32 2147483647, %v1186
  %v1189 = vcvt.s32.f32 %v1182
  %v1190 = vmul.f32 %v1189, %v1187
  %v1191 = vxor.u32 %v1190, 2147483648
  %v1192 = vsel %vm1109, %v1191, %v1190
  %v1193 = vsub.s32 4, %v1169
  %v1194 = vsel %vm1109, %v1193, %v1169
  %v1195 = vsel %vm1108, %v177, %v1192
  %v1196 = vsel %vm1108, 0, %v1194
  %v1197 = vcosq.f32.pop %v1195
  %v1198 = vsinq.f32.pop %v1195
  %vm1199 = vweird.f32 %v177
  %v1200 = vand.u32 %v1196, 3
  %vm1201 = vcmp.lt.s32.totalorder %v1200, 2
  %vm1202 = vcmp.eq.s32.totalorder %v1200, 0
  %v1203 = vxor.u32 %v1198, 2147483648
  %v1204 = vsel %vm1202, %v1197, %v1203
  %vm1205 = vcmp.eq.s32.totalorder %v1200, 2
  %v1206 = vxor.u32 %v1197, 2147483648
  %v1207 = vsel %vm1205, %v1206, %v1198
  %v1208 = vsel %vm1201, %v1204, %v1207
  %v1209 = vsel %vm1199, nan, %v1208
  %v1210 = vand.u32 2147483647, %v178
  %vm1211 = vcmp.le.f32.partialorder %v1210, 0.7853982
  %vm1212 = vcmp.lt.s32.totalorder %v178, 0
  %v1213 = vand.u32 %v178, 2139095040
  %v1214 = vshrl.u32 %v1213, 23
  %v1215 = vsub.s32 %v1214, 127
  %v1216 = vand.u32 2147483647, %v178
  %v1217 = vand.u32 %v1216, 8388607
  %v1218 = vor.u32 %v1217, 8388608
  %v1219 = vsub.s32 0, %v1218
  %v1220 = vadd.s32 %v1215, 1
  %vm1221 = vcmp.gt.s32.totalorder %v1220, 0
  %v1222 = vsel %vm1221, %v1220, 0
  %v1223 = vshrl.u32 %v1222, 5
  %v1224 = vand.u32 %v1222, 31
  %v1225 = vsub.s32 32, %v1224
  %v1226 = vshrl.u32 683565275, %v1225
  %v1227 = vshll.u32 683565275, %v1224
  %v1228 = vshrl.u32 2475754826, %v1225
  %v1229 = vor.u32 %v1227, %v1228
  %v1230 = vshll.u32 2475754826, %v1224
  %v1231 = vshrl.u32 2131351028, %v1225
  %v1232 = vor.u32 %v1230, %v1231
  %v1233 = vshll.u32 2131351028, %v1224
  %v1234 = vshrl.u32 2102212464, %v1225
  %v1235 = vor.u32 %v1233, %v1234
  %v1236 = vshll.u32 2102212464, %v1224
  %v1237 = vshrl.u32 920167782, %v1225
  %v1238 = vor.u32 %v1236, %v1237
  %v1239 = vshll.u32 920167782, %v1224
  %v1240 = vshrl.u32 1326507024, %v1225
  %v1241 = vor.u32 %v1239, %v1240
  %vm1242 = vcmp.lt.s32.totalorder %v1223, 1
  %vm1243 = vcmp.lt.s32.totalorder %v1223, 2
  %vm1244 = vcmp.lt.s32.totalorder %v1223, 3
  %vm1245 = vcmp.lt.s32.totalorder %v1223, 4
  %v1246 = vsel %vm1242, %v1226, %v1229
  %v1247 = vsel %vm1245, %v1235, 2102212464
  %v1248 = vsel %vm1244, %v1232, %v1247
  %v1249 = vsel %vm1243, %v1246, %v1248
  %v1250 = vsel %vm1242, %v1229, %v1232
  %v1251 = vsel %vm1245, %v1238, 920167782
  %v1252 = vsel %vm1244, %v1235, %v1251
  %v1253 = vsel %vm1243, %v1250, %v1252
  %v1254 = vsel %vm1242, %v1232, %v1235
  %v1255 = vsel %vm1245, %v1241, 1326507024
  %v1256 = vsel %vm1244, %v1238, %v1255
  %v1257 = vsel %vm1243, %v1254, %v1256
  %v1258 = vshll.u32 %v1218, 8
  %v1259 = vmul.u32.u64.compose %v1258, %v1257
  %v1260 = vextract.low.u32 %v1259
  %v1261 = vextract.high.u32 %v1259
  %v1262 = vmul.u32.u64.compose %v1258, %v1253
  %v1263 = vextract.low.u32 %v1262
  %v1264 = vextract.high.u32 %v1262
  %v1265 = vmul.u32 %v1258, %v1249
  %v1266 = vadd.s32 %v1261, %v1263
  %vm1267 = vc.u32 %v1261, %v1263
  %v1268 = vadd.s32 %v1264, 1
  %v1269 = vsel %vm1267, %v1268, %v1264
  %v1270 = vadd.s32 %v1265, %v1269
  %v1271 = vadd.s32 %v1270, 536870912
  %v1272 = vshrl.u32 %v1271, 30
  %v1273 = vshll.u32 %v1272, 30
  %v1274 = vsub.s32 %v1270, %v1273
  %vm1275 = vcmp.lt.s32.totalorder %v1274, 0
  %v1276 = vsub.s32 0, %v1274
  %v1277 = vsel %vm1275, %v1276, %v1274
  %v1278 = vclz %v1277
  %v1279 = vsub.s32 %v1278, 2
  %vm1280 = vcmp.gt.s32.totalorder 0, %v1279
  %v1281 = vsel %vm1280, 0, %v1279
  %v1282 = vsub.s32 32, %v1281
  %v1283 = vshll.u32 %v1274, %v1281
  %v1284 = vshrl.u32 %v1266, %v1282
  %v1285 = vor.u32 %v1283, %v1284
  %v1286 = vsub.s32 4294967266, %v1281
  %v1287 = vadd.s32 %v1286, 127
  %v1288 = vshll.u32 %v1287, 23
  %v1289 = vor.u32 4788187, %v1288
  %v1290 = vand.u32 2147483647, %v1289
  %v1292 = vcvt.s32.f32 %v1285
  %v1293 = vmul.f32 %v1292, %v1290
  %v1294 = vxor.u32 %v1293, 2147483648
  %v1295 = vsel %vm1212, %v1294, %v1293
  %v1296 = vsub.s32 4, %v1272
  %v1297 = vsel %vm1212, %v1296, %v1272
  %v1298 = vsel %vm1211, %v178, %v1295
  %v1299 = vsel %vm1211, 0, %v1297
  %v1300 = vcosq.f32.pop %v1298
  %v1301 = vsinq.f32.pop %v1298
  %vm1302 = vweird.f32 %v178
  %v1303 = vand.u32 %v1299, 3
  %vm1304 = vcmp.lt.s32.totalorder %v1303, 2
  %vm1305 = vcmp.eq.s32.totalorder %v1303, 0
  %v1306 = vxor.u32 %v1301, 2147483648
  %v1307 = vsel %vm1305, %v1300, %v1306
  %vm1308 = vcmp.eq.s32.totalorder %v1303, 2
  %v1309 = vxor.u32 %v1300, 2147483648
  %v1310 = vsel %vm1308, %v1309, %v1301
  %v1311 = vsel %vm1304, %v1307, %v1310
  %v1312 = vsel %vm1302, nan, %v1311
  %v1313 = vand.u32 2147483647, %v179
  %vm1314 = vcmp.le.f32.partialorder %v1313, 0.7853982
  %vm1315 = vcmp.lt.s32.totalorder %v179, 0
  %v1316 = vand.u32 %v179, 2139095040
  %v1317 = vshrl.u32 %v1316, 23
  %v1318 = vsub.s32 %v1317, 127
  %v1319 = vand.u32 2147483647, %v179
  %v1320 = vand.u32 %v1319, 8388607
  %v1321 = vor.u32 %v1320, 8388608
  %v1322 = vsub.s32 0, %v1321
  %v1323 = vadd.s32 %v1318, 1
  %vm1324 = vcmp.gt.s32.totalorder %v1323, 0
  %v1325 = vsel %vm1324, %v1323, 0
  %v1326 = vshrl.u32 %v1325, 5
  %v1327 = vand.u32 %v1325, 31
  %v1328 = vsub.s32 32, %v1327
  %v1329 = vshrl.u32 683565275, %v1328
  %v1330 = vshll.u32 683565275, %v1327
  %v1331 = vshrl.u32 2475754826, %v1328
  %v1332 = vor.u32 %v1330, %v1331
  %v1333 = vshll.u32 2475754826, %v1327
  %v1334 = vshrl.u32 2131351028, %v1328
  %v1335 = vor.u32 %v1333, %v1334
  %v1336 = vshll.u32 2131351028, %v1327
  %v1337 = vshrl.u32 2102212464, %v1328
  %v1338 = vor.u32 %v1336, %v1337
  %v1339 = vshll.u32 2102212464, %v1327
  %v1340 = vshrl.u32 920167782, %v1328
  %v1341 = vor.u32 %v1339, %v1340
  %v1342 = vshll.u32 920167782, %v1327
  %v1343 = vshrl.u32 1326507024, %v1328
  %v1344 = vor.u32 %v1342, %v1343
  %vm1345 = vcmp.lt.s32.totalorder %v1326, 1
  %vm1346 = vcmp.lt.s32.totalorder %v1326, 2
  %vm1347 = vcmp.lt.s32.totalorder %v1326, 3
  %vm1348 = vcmp.lt.s32.totalorder %v1326, 4
  %v1349 = vsel %vm1345, %v1329, %v1332
  %v1350 = vsel %vm1348, %v1338, 2102212464
  %v1351 = vsel %vm1347, %v1335, %v1350
  %v1352 = vsel %vm1346, %v1349, %v1351
  %v1353 = vsel %vm1345, %v1332, %v1335
  %v1354 = vsel %vm1348, %v1341, 920167782
  %v1355 = vsel %vm1347, %v1338, %v1354
  %v1356 = vsel %vm1346, %v1353, %v1355
  %v1357 = vsel %vm1345, %v1335, %v1338
  %v1358 = vsel %vm1348, %v1344, 1326507024
  %v1359 = vsel %vm1347, %v1341, %v1358
  %v1360 = vsel %vm1346, %v1357, %v1359
  %v1361 = vshll.u32 %v1321, 8
  %v1362 = vmul.u32.u64.compose %v1361, %v1360
  %v1363 = vextract.low.u32 %v1362
  %v1364 = vextract.high.u32 %v1362
  %v1365 = vmul.u32.u64.compose %v1361, %v1356
  %v1366 = vextract.low.u32 %v1365
  %v1367 = vextract.high.u32 %v1365
  %v1368 = vmul.u32 %v1361, %v1352
  %v1369 = vadd.s32 %v1364, %v1366
  %vm1370 = vc.u32 %v1364, %v1366
  %v1371 = vadd.s32 %v1367, 1
  %v1372 = vsel %vm1370, %v1371, %v1367
  %v1373 = vadd.s32 %v1368, %v1372
  %v1374 = vadd.s32 %v1373, 536870912
  %v1375 = vshrl.u32 %v1374, 30
  %v1376 = vshll.u32 %v1375, 30
  %v1377 = vsub.s32 %v1373, %v1376
  %vm1378 = vcmp.lt.s32.totalorder %v1377, 0
  %v1379 = vsub.s32 0, %v1377
  %v1380 = vsel %vm1378, %v1379, %v1377
  %v1381 = vclz %v1380
  %v1382 = vsub.s32 %v1381, 2
  %vm1383 = vcmp.gt.s32.totalorder 0, %v1382
  %v1384 = vsel %vm1383, 0, %v1382
  %v1385 = vsub.s32 32, %v1384
  %v1386 = vshll.u32 %v1377, %v1384
  %v1387 = vshrl.u32 %v1369, %v1385
  %v1388 = vor.u32 %v1386, %v1387
  %v1389 = vsub.s32 4294967266, %v1384
  %v1390 = vadd.s32 %v1389, 127
  %v1391 = vshll.u32 %v1390, 23
  %v1392 = vor.u32 4788187, %v1391
  %v1393 = vand.u32 2147483647, %v1392
  %v1395 = vcvt.s32.f32 %v1388
  %v1396 = vmul.f32 %v1395, %v1393
  %v1397 = vxor.u32 %v1396, 2147483648
  %v1398 = vsel %vm1315, %v1397, %v1396
  %v1399 = vsub.s32 4, %v1375
  %v1400 = vsel %vm1315, %v1399, %v1375
  %v1401 = vsel %vm1314, %v179, %v1398
  %v1402 = vsel %vm1314, 0, %v1400
  %v1403 = vcosq.f32.pop %v1401
  %v1404 = vsinq.f32.pop %v1401
  %vm1405 = vweird.f32 %v179
  %v1406 = vand.u32 %v1402, 3
  %vm1407 = vcmp.lt.s32.totalorder %v1406, 2
  %vm1408 = vcmp.eq.s32.totalorder %v1406, 0
  %v1409 = vxor.u32 %v1404, 2147483648
  %v1410 = vsel %vm1408, %v1403, %v1409
  %vm1411 = vcmp.eq.s32.totalorder %v1406, 2
  %v1412 = vxor.u32 %v1403, 2147483648
  %v1413 = vsel %vm1411, %v1412, %v1404
  %v1414 = vsel %vm1407, %v1410, %v1413
  %v1415 = vsel %vm1405, nan, %v1414
  %1428 = vrot.lane.b32.xlu0 %v282, 2
  %v1429 = vpop.permute.xlu0 %1428
  %1430 = vrot.lane.b32.xlu0 %v385, 2
  %v1431 = vpop.permute.xlu0 %1430
  %1432 = vrot.lane.b32.xlu0 %v488, 2
  %v1433 = vpop.permute.xlu0 %1432
  %1434 = vrot.lane.b32.xlu0 %v591, 2
  %v1435 = vpop.permute.xlu0 %1434
  %1436 = vrot.lane.b32.xlu0 %v694, 2
  %v1437 = vpop.permute.xlu0 %1436
  %1438 = vrot.lane.b32.xlu0 %v797, 2
  %v1439 = vpop.permute.xlu0 %1438
  %1440 = vrot.lane.b32.xlu0 %v900, 2
  %v1441 = vpop.permute.xlu0 %1440
  %1442 = vrot.lane.b32.xlu0 %v1003, 2
  %v1443 = vpop.permute.xlu0 %1442
  %1444 = vrot.lane.b32.xlu0 %v1106, 2
  %v1445 = vpop.permute.xlu0 %1444
  %1446 = vrot.lane.b32.xlu0 %v1209, 2
  %v1447 = vpop.permute.xlu0 %1446
  %1448 = vrot.lane.b32.xlu0 %v1312, 2
  %v1449 = vpop.permute.xlu0 %1448
  %1450 = vrot.lane.b32.xlu0 %v1415, 2
  %v1451 = vpop.permute.xlu0 %1450
  %v1464 = vmul.f32 %v72, %v1429
  %v1465 = vmul.f32 %v73, %v1431
  %v1466 = vmul.f32 %v74, %v1433
  %v1467 = vmul.f32 %v75, %v1435
  %v1468 = vmul.f32 %v76, %v1437
  %v1469 = vmul.f32 %v77, %v1439
  %v1470 = vmul.f32 %v78, %v1441
  %v1471 = vmul.f32 %v79, %v1443
  %v1472 = vmul.f32 %v80, %v1445
  %v1473 = vmul.f32 %v81, %v1447
  %v1474 = vmul.f32 %v82, %v1449
  %v1475 = vmul.f32 %v83, %v1451
  %1488 = vrot.lane.b32.xlu0 %v84, 1
  %v1489 = vpop.permute.xlu0 %1488
  %1490 = vrot.lane.b32.xlu0 %v85, 1
  %v1491 = vpop.permute.xlu0 %1490
  %1492 = vrot.lane.b32.xlu0 %v86, 1
  %v1493 = vpop.permute.xlu0 %1492
  %1494 = vrot.lane.b32.xlu0 %v87, 1
  %v1495 = vpop.permute.xlu0 %1494
  %1496 = vrot.lane.b32.xlu0 %v88, 1
  %v1497 = vpop.permute.xlu0 %1496
  %1498 = vrot.lane.b32.xlu0 %v89, 1
  %v1499 = vpop.permute.xlu0 %1498
  %1500 = vrot.lane.b32.xlu0 %v90, 1
  %v1501 = vpop.permute.xlu0 %1500
  %1502 = vrot.lane.b32.xlu0 %v91, 1
  %v1503 = vpop.permute.xlu0 %1502
  %1504 = vrot.lane.b32.xlu0 %v92, 1
  %v1505 = vpop.permute.xlu0 %1504
  %1506 = vrot.lane.b32.xlu0 %v93, 1
  %v1507 = vpop.permute.xlu0 %1506
  %1508 = vrot.lane.b32.xlu0 %v94, 1
  %v1509 = vpop.permute.xlu0 %1508
  %1510 = vrot.lane.b32.xlu0 %v95, 1
  %v1511 = vpop.permute.xlu0 %1510
  %v1524 = vmul.f32 %v1464, %v1489
  %v1525 = vmul.f32 %v1465, %v1491
  %v1526 = vmul.f32 %v1466, %v1493
  %v1527 = vmul.f32 %v1467, %v1495
  %v1528 = vmul.f32 %v1468, %v1497
  %v1529 = vmul.f32 %v1469, %v1499
  %v1530 = vmul.f32 %v1470, %v1501
  %v1531 = vmul.f32 %v1471, %v1503
  %v1532 = vmul.f32 %v1472, %v1505
  %v1533 = vmul.f32 %v1473, %v1507
  %v1534 = vmul.f32 %v1474, %v1509
  %v1535 = vmul.f32 %v1475, %v1511
  %v1536 = vmax.f32 %v1524, 0.0
  %v1537 = vmax.f32 %v1525, 0.0
  %v1538 = vmax.f32 %v1526, 0.0
  %v1539 = vmax.f32 %v1527, 0.0
  %v1540 = vmax.f32 %v1528, 0.0
  %v1541 = vmax.f32 %v1529, 0.0
  %v1542 = vmax.f32 %v1530, 0.0
  %v1543 = vmax.f32 %v1531, 0.0
  %v1544 = vmax.f32 %v1532, 0.0
  %v1545 = vmax.f32 %v1533, 0.0
  %v1546 = vmax.f32 %v1534, 0.0
  %v1547 = vmax.f32 %v1535, 0.0
  %v1548 = vld [vmem:[%s4] sm:$0xff]
  %v1549 = vld [vmem:[%s4 + $0x8] sm:$0x3]
  %v1550 = vld [vmem:[%s5] sm:$0x1]
  %1552 = vset.pattern.permute.xlu0 2
  %1553 = vperm.xlu0 %1552, %v1536
  %v1554 = vpop.permute.xlu0 %1553
  %1557 = vset.pattern.permute.xlu0 2
  %1558 = vperm.xlu0 %1557, %v1537
  %v1559 = vpop.permute.xlu0 %1558
  %1562 = vset.pattern.permute.xlu0 2
  %1563 = vperm.xlu0 %1562, %v1538
  %v1564 = vpop.permute.xlu0 %1563
  %1567 = vset.pattern.permute.xlu0 2
  %1568 = vperm.xlu0 %1567, %v1539
  %v1569 = vpop.permute.xlu0 %1568
  %1572 = vset.pattern.permute.xlu0 2
  %1573 = vperm.xlu0 %1572, %v1540
  %v1574 = vpop.permute.xlu0 %1573
  %1577 = vset.pattern.permute.xlu0 2
  %1578 = vperm.xlu0 %1577, %v1541
  %v1579 = vpop.permute.xlu0 %1578
  %1582 = vset.pattern.permute.xlu0 2
  %1583 = vperm.xlu0 %1582, %v1542
  %v1584 = vpop.permute.xlu0 %1583
  %1587 = vset.pattern.permute.xlu0 2
  %1588 = vperm.xlu0 %1587, %v1543
  %v1589 = vpop.permute.xlu0 %1588
  %1592 = vset.pattern.permute.xlu0 2
  %1593 = vperm.xlu0 %1592, %v1544
  %v1594 = vpop.permute.xlu0 %1593
  %1597 = vset.pattern.permute.xlu0 2
  %1598 = vperm.xlu0 %1597, %v1545
  %v1599 = vpop.permute.xlu0 %1598
  %1602 = vset.pattern.permute.xlu0 2
  %1603 = vperm.xlu0 %1602, %v1546
  %v1604 = vpop.permute.xlu0 %1603
  %1607 = vset.pattern.permute.xlu0 2
  %1608 = vperm.xlu0 %1607, %v1547
  %v1609 = vpop.permute.xlu0 %1608
  %v1611 = vlaneseq
  %v1612 = vshrl.u32 %v1611, 7
  %v1613 = vsub.s32 0, %v1612
  %v1614 = vrot.slane %v1550, %v1613
  %v1615 = vmul.f32 %v1554, %v1614
  %v1616 = vmul.f32 %v1559, %v1614
  %v1617 = vmul.f32 %v1564, %v1614
  %v1618 = vmul.f32 %v1569, %v1614
  %v1619 = vmul.f32 %v1574, %v1614
  %v1620 = vmul.f32 %v1579, %v1614
  %v1621 = vmul.f32 %v1584, %v1614
  %v1622 = vmul.f32 %v1589, %v1614
  %v1623 = vmul.f32 %v1594, %v1614
  %v1624 = vmul.f32 %v1599, %v1614
  %v1625 = vmul.f32 %v1604, %v1614
  %v1626 = vmul.f32 %v1609, %v1614
  %vm1627 = vcmask 80896
  %v1629 = vsel %vm1627, %v30, 0
  %v1632 = vsel %vm1627, %v31, 0
  %v1635 = vsel %vm1627, %v32, 0
  %v1638 = vsel %vm1627, %v33, 0
  %v1641 = vsel %vm1627, %v34, 0
  %v1644 = vsel %vm1627, %v35, 0
  %v1647 = vsel %vm1627, %v36, 0
  %v1650 = vsel %vm1627, %v37, 0
  %v1653 = vsel %vm1627, %v38, 0
  %v1656 = vsel %vm1627, %v39, 0
  %v1659 = vsel %vm1627, %v40, 0
  %v1662 = vsel %vm1627, %v41, 0
  %vm1664 = vcmask 1041408
  %v1666 = vsel %vm1664, %v1549, 0
  %1668 = vmatprep.subr.mxu0 0.0
  %1669 = vmatpush1.msra.mxu0 %v1548
  %1670 = vmatprep.subr.mxu0 0.0
  %1671 = vmatpush1.msra.mxu0 %v1666
  %1672 = vmatprep.subr.mxu0 0.0
  %1673 = vmatpush1.msra.mxu0 0.0
  %1674 = vmatprep.subr.mxu0 0.0
  %1675 = vmatpush1.msra.mxu0 0.0
  %1676 = vmatprep.subr.mxu0 0.0
  %1677 = vmatpush1.msra.mxu0 0.0
  %1678 = vmatprep.subr.mxu0 0.0
  %1679 = vmatpush1.msra.mxu0 0.0
  %1680 = vmatprep.subr.mxu0 0.0
  %1681 = vmatpush1.msra.mxu0 0.0
  %1682 = vmatprep.subr.mxu0 0.0
  %1683 = vmatpush1.msra.mxu0 0.0
  %1684 = vmatprep.subr.mxu0 0.0
  %1685 = vmatpush1.msra.mxu0 0.0
  %1686 = vmatprep.subr.mxu0 0.0
  %1687 = vmatpush1.msra.mxu0 0.0
  %1688 = vmatprep.subr.mxu0 0.0
  %1689 = vmatpush1.msra.mxu0 0.0
  %1690 = vmatprep.subr.mxu0 0.0
  %1691 = vmatpush1.msra.mxu0 0.0
  %1692 = vmatprep.subr.mxu0 0.0
  %1693 = vmatpush1.msra.mxu0 0.0
  %1694 = vmatprep.subr.mxu0 0.0
  %1695 = vmatpush1.msra.mxu0 0.0
  %1696 = vmatprep.subr.mxu0 0.0
  %1697 = vmatpush1.msra.mxu0 0.0
  %1698 = vmatprep.subr.mxu0 0.0
  %1699 = vmatpush1.msra.mxu0 0.0
  %1700 = vmatprep.subr.mxu0 0.0
  %1701 = vmatpush1.msra.mxu0 0.0
  %1702 = vmatprep.subr.mxu0 0.0
  %1703 = vmatpush1.msra.mxu0 0.0
  %1704 = vmatprep.subr.mxu0 0.0
  %1705 = vmatpush1.msra.mxu0 0.0
  %1706 = vmatprep.subr.mxu0 0.0
  %1707 = vmatpush1.msra.mxu0 0.0
  %1708 = vmatprep.subr.mxu0 0.0
  %1709 = vmatpush1.msra.mxu0 0.0
  %1710 = vmatprep.subr.mxu0 0.0
  %1711 = vmatpush1.msra.mxu0 0.0
  %1712 = vmatprep.subr.mxu0 0.0
  %1713 = vmatpush1.msra.mxu0 0.0
  %1714 = vmatprep.subr.mxu0 0.0
  %1715 = vmatpush1.msra.mxu0 0.0
  %1716 = vmatprep.subr.mxu0 0.0
  %1717 = vmatpush1.msra.mxu0 0.0
  %1718 = vmatprep.subr.mxu0 0.0
  %1719 = vmatpush1.msra.mxu0 0.0
  %1720 = vmatprep.subr.mxu0 0.0
  %1721 = vmatpush1.msra.mxu0 0.0
  %1722 = vmatprep.subr.mxu0 0.0
  %1723 = vmatpush1.msra.mxu0 0.0
  %1724 = vmatprep.subr.mxu0 0.0
  %1725 = vmatpush1.msra.mxu0 0.0
  %1726 = vmatprep.subr.mxu0 0.0
  %1727 = vmatpush1.msra.mxu0 0.0
  %1728 = vmatprep.subr.mxu0 0.0
  %1729 = vmatpush1.msra.mxu0 0.0
  %1730 = vmatprep.subr.mxu0 0.0
  %1731 = vmatpush1.msra.mxu0 0.0
  %1732 = vmatprep.mubr.f32.mxu0 0.0
  %1733 = vmatmul.mubr.f32.gmra.mrb[0].mxu0 %v1629
  %v1734 = vpop.f32.mrb[0].mxu0
  %v1735 = vadd.f32 %v1615, %v1734
  %v1736 = vpop.f32.mrb[0].mxu0
  %1737 = vmatprep.mubr.f32.mxu0 0.0
  %1738 = vmatmul.mubr.f32.gmra.mrb[0].mxu0 %v1632
  %v1739 = vpop.f32.mrb[0].mxu0
  %v1740 = vadd.f32 %v1616, %v1739
  %v1741 = vpop.f32.mrb[0].mxu0
  %1742 = vmatprep.mubr.f32.mxu0 0.0
  %1743 = vmatmul.mubr.f32.gmra.mrb[0].mxu0 %v1635
  %v1744 = vpop.f32.mrb[0].mxu0
  %v1745 = vadd.f32 %v1617, %v1744
  %v1746 = vpop.f32.mrb[0].mxu0
  %1747 = vmatprep.mubr.f32.mxu0 0.0
  %1748 = vmatmul.mubr.f32.gmra.mrb[0].mxu0 %v1638
  %v1749 = vpop.f32.mrb[0].mxu0
  %v1750 = vadd.f32 %v1618, %v1749
  %v1751 = vpop.f32.mrb[0].mxu0
  %1752 = vmatprep.mubr.f32.mxu0 0.0
  %1753 = vmatmul.mubr.f32.gmra.mrb[0].mxu0 %v1641
  %v1754 = vpop.f32.mrb[0].mxu0
  %v1755 = vadd.f32 %v1619, %v1754
  %v1756 = vpop.f32.mrb[0].mxu0
  %1757 = vmatprep.mubr.f32.mxu0 0.0
  %1758 = vmatmul.mubr.f32.gmra.mrb[0].mxu0 %v1644
  %v1759 = vpop.f32.mrb[0].mxu0
  %v1760 = vadd.f32 %v1620, %v1759
  %v1761 = vpop.f32.mrb[0].mxu0
  %1762 = vmatprep.mubr.f32.mxu0 0.0
  %1763 = vmatmul.mubr.f32.gmra.mrb[0].mxu0 %v1647
  %v1764 = vpop.f32.mrb[0].mxu0
  %v1765 = vadd.f32 %v1621, %v1764
  %v1766 = vpop.f32.mrb[0].mxu0
  %1767 = vmatprep.mubr.f32.mxu0 0.0
  %1768 = vmatmul.mubr.f32.gmra.mrb[0].mxu0 %v1650
  %v1769 = vpop.f32.mrb[0].mxu0
  %v1770 = vadd.f32 %v1622, %v1769
  %v1771 = vpop.f32.mrb[0].mxu0
  %1772 = vmatprep.mubr.f32.mxu0 0.0
  %1773 = vmatmul.mubr.f32.gmra.mrb[0].mxu0 %v1653
  %v1774 = vpop.f32.mrb[0].mxu0
  %v1775 = vadd.f32 %v1623, %v1774
  %v1776 = vpop.f32.mrb[0].mxu0
  %1777 = vmatprep.mubr.f32.mxu0 0.0
  %1778 = vmatmul.mubr.f32.gmra.mrb[0].mxu0 %v1656
  %v1779 = vpop.f32.mrb[0].mxu0
  %v1780 = vadd.f32 %v1624, %v1779
  %v1781 = vpop.f32.mrb[0].mxu0
  %1782 = vmatprep.mubr.f32.mxu0 0.0
  %1783 = vmatmul.mubr.f32.gmra.mrb[0].mxu0 %v1659
  %v1784 = vpop.f32.mrb[0].mxu0
  %v1785 = vadd.f32 %v1625, %v1784
  %v1786 = vpop.f32.mrb[0].mxu0
  %1787 = vmatprep.mubr.f32.mxu0 0.0
  %1788 = vmatmul.mubr.f32.gmra.mrb[0].mxu0 %v1662
  %v1789 = vpop.f32.mrb[0].mxu0
  %v1790 = vadd.f32 %v1626, %v1789
  %v1791 = vpop.f32.mrb[0].mxu0
  %1792 = vdwg.mxu0
  %v1793 = vld [vmem:[%s5 + $0x1] sm:$0x1]
  %v1794 = vlaneseq
  %v1795 = vshrl.u32 %v1794, 7
  %v1796 = vsub.s32 0, %v1795
  %v1797 = vrot.slane %v1793, %v1796
  %v1798 = vadd.f32 %v1735, %v1797
  %v1799 = vadd.f32 %v1740, %v1797
  %v1800 = vadd.f32 %v1745, %v1797
  %v1801 = vadd.f32 %v1750, %v1797
  %v1802 = vadd.f32 %v1755, %v1797
  %v1803 = vadd.f32 %v1760, %v1797
  %v1804 = vadd.f32 %v1765, %v1797
  %v1805 = vadd.f32 %v1770, %v1797
  %v1806 = vadd.f32 %v1775, %v1797
  %v1807 = vadd.f32 %v1780, %v1797
  %v1808 = vadd.f32 %v1785, %v1797
  %v1809 = vadd.f32 %v1790, %v1797
  %v1810 = vxor.u32 %v1798, 2147483648
  %v1811 = vxor.u32 %v1799, 2147483648
  %v1812 = vxor.u32 %v1800, 2147483648
  %v1813 = vxor.u32 %v1801, 2147483648
  %v1814 = vxor.u32 %v1802, 2147483648
  %v1815 = vxor.u32 %v1803, 2147483648
  %v1816 = vxor.u32 %v1804, 2147483648
  %v1817 = vxor.u32 %v1805, 2147483648
  %v1818 = vxor.u32 %v1806, 2147483648
  %v1819 = vxor.u32 %v1807, 2147483648
  %v1820 = vxor.u32 %v1808, 2147483648
  %v1821 = vxor.u32 %v1809, 2147483648
  %v1822 = vmul.f32 %v1810, 1.442695
  %v1823 = vpow.pop %v1822
  %v1824 = vmul.f32 %v1811, 1.442695
  %v1825 = vpow.pop %v1824
  %v1826 = vmul.f32 %v1812, 1.442695
  %v1827 = vpow.pop %v1826
  %v1828 = vmul.f32 %v1813, 1.442695
  %v1829 = vpow.pop %v1828
  %v1830 = vmul.f32 %v1814, 1.442695
  %v1831 = vpow.pop %v1830
  %v1832 = vmul.f32 %v1815, 1.442695
  %v1833 = vpow.pop %v1832
  %v1834 = vmul.f32 %v1816, 1.442695
  %v1835 = vpow.pop %v1834
  %v1836 = vmul.f32 %v1817, 1.442695
  %v1837 = vpow.pop %v1836
  %v1838 = vmul.f32 %v1818, 1.442695
  %v1839 = vpow.pop %v1838
  %v1840 = vmul.f32 %v1819, 1.442695
  %v1841 = vpow.pop %v1840
  %v1842 = vmul.f32 %v1820, 1.442695
  %v1843 = vpow.pop %v1842
  %v1844 = vmul.f32 %v1821, 1.442695
  %v1845 = vpow.pop %v1844
  %v1846 = vadd.f32 %v1823, 1.0
  %v1847 = vadd.f32 %v1825, 1.0
  %v1848 = vadd.f32 %v1827, 1.0
  %v1849 = vadd.f32 %v1829, 1.0
  %v1850 = vadd.f32 %v1831, 1.0
  %v1851 = vadd.f32 %v1833, 1.0
  %v1852 = vadd.f32 %v1835, 1.0
  %v1853 = vadd.f32 %v1837, 1.0
  %v1854 = vadd.f32 %v1839, 1.0
  %v1855 = vadd.f32 %v1841, 1.0
  %v1856 = vadd.f32 %v1843, 1.0
  %v1857 = vadd.f32 %v1845, 1.0
  %v1858 = vrcp.pop %v1846
  %v1859 = vmul.f32 1.0, %v1858
  %v1860 = vrcp.pop %v1847
  %v1861 = vmul.f32 1.0, %v1860
  %v1862 = vrcp.pop %v1848
  %v1863 = vmul.f32 1.0, %v1862
  %v1864 = vrcp.pop %v1849
  %v1865 = vmul.f32 1.0, %v1864
  %v1866 = vrcp.pop %v1850
  %v1867 = vmul.f32 1.0, %v1866
  %v1868 = vrcp.pop %v1851
  %v1869 = vmul.f32 1.0, %v1868
  %v1870 = vrcp.pop %v1852
  %v1871 = vmul.f32 1.0, %v1870
  %v1872 = vrcp.pop %v1853
  %v1873 = vmul.f32 1.0, %v1872
  %v1874 = vrcp.pop %v1854
  %v1875 = vmul.f32 1.0, %v1874
  %v1876 = vrcp.pop %v1855
  %v1877 = vmul.f32 1.0, %v1876
  %v1878 = vrcp.pop %v1856
  %v1879 = vmul.f32 1.0, %v1878
  %v1880 = vrcp.pop %v1857
  %v1881 = vmul.f32 1.0, %v1880
  %v1882 = vld [vmem:[%s6] sm:$0xff]
  %v1883 = vld [vmem:[%s6 + $0x8] sm:$0xff]
  %v1884 = vld [vmem:[%s6 + $0x10] sm:$0xff]
  %v1885 = vld [vmem:[%s6 + $0x18] sm:$0xff]
  %v1886 = vld [vmem:[%s6 + $0x20] sm:$0x1]
  %v1887 = vlaneseq
  %v1888 = vshrl.u32 %v1887, 7
  %v1889 = vsub.s32 0, %v1888
  %v1890 = vrot.slane %v1886, %v1889
  %vm1891 = vcmask 261120
  %v1893 = vsel %vm1891, %v1859, 0
  %v1896 = vsel %vm1891, %v1861, 0
  %v1899 = vsel %vm1891, %v1863, 0
  %v1902 = vsel %vm1891, %v1865, 0
  %v1905 = vsel %vm1891, %v1867, 0
  %v1908 = vsel %vm1891, %v1869, 0
  %v1911 = vsel %vm1891, %v1871, 0
  %v1914 = vsel %vm1891, %v1873, 0
  %v1917 = vsel %vm1891, %v1875, 0
  %v1920 = vsel %vm1891, %v1877, 0
  %v1923 = vsel %vm1891, %v1879, 0
  %v1926 = vsel %vm1891, %v1881, 0
  %1928 = vmatprep.subr.mxu0 0.0
  %1929 = vmatpush1.msra.mxu0 %v1882
  %1930 = vmatprep.subr.mxu0 0.0
  %1931 = vmatpush1.msra.mxu0 %v1883
  %1932 = vmatprep.subr.mxu0 0.0
  %1933 = vmatpush1.msra.mxu0 %v1884
  %1934 = vmatprep.subr.mxu0 0.0
  %1935 = vmatpush1.msra.mxu0 %v1885
  %1936 = vmatprep.subr.mxu0 0.0
  %1937 = vmatpush1.msra.mxu0 0.0
  %1938 = vmatprep.subr.mxu0 0.0
  %1939 = vmatpush1.msra.mxu0 0.0
  %1940 = vmatprep.subr.mxu0 0.0
  %1941 = vmatpush1.msra.mxu0 0.0
  %1942 = vmatprep.subr.mxu0 0.0
  %1943 = vmatpush1.msra.mxu0 0.0
  %1944 = vmatprep.subr.mxu0 0.0
  %1945 = vmatpush1.msra.mxu0 0.0
  %1946 = vmatprep.subr.mxu0 0.0
  %1947 = vmatpush1.msra.mxu0 0.0
  %1948 = vmatprep.subr.mxu0 0.0
  %1949 = vmatpush1.msra.mxu0 0.0
  %1950 = vmatprep.subr.mxu0 0.0
  %1951 = vmatpush1.msra.mxu0 0.0
  %1952 = vmatprep.subr.mxu0 0.0
  %1953 = vmatpush1.msra.mxu0 0.0
  %1954 = vmatprep.subr.mxu0 0.0
  %1955 = vmatpush1.msra.mxu0 0.0
  %1956 = vmatprep.subr.mxu0 0.0
  %1957 = vmatpush1.msra.mxu0 0.0
  %1958 = vmatprep.subr.mxu0 0.0
  %1959 = vmatpush1.msra.mxu0 0.0
  %1960 = vmatprep.subr.mxu0 0.0
  %1961 = vmatpush1.msra.mxu0 0.0
  %1962 = vmatprep.subr.mxu0 0.0
  %1963 = vmatpush1.msra.mxu0 0.0
  %1964 = vmatprep.subr.mxu0 0.0
  %1965 = vmatpush1.msra.mxu0 0.0
  %1966 = vmatprep.subr.mxu0 0.0
  %1967 = vmatpush1.msra.mxu0 0.0
  %1968 = vmatprep.subr.mxu0 0.0
  %1969 = vmatpush1.msra.mxu0 0.0
  %1970 = vmatprep.subr.mxu0 0.0
  %1971 = vmatpush1.msra.mxu0 0.0
  %1972 = vmatprep.subr.mxu0 0.0
  %1973 = vmatpush1.msra.mxu0 0.0
  %1974 = vmatprep.subr.mxu0 0.0
  %1975 = vmatpush1.msra.mxu0 0.0
  %1976 = vmatprep.subr.mxu0 0.0
  %1977 = vmatpush1.msra.mxu0 0.0
  %1978 = vmatprep.subr.mxu0 0.0
  %1979 = vmatpush1.msra.mxu0 0.0
  %1980 = vmatprep.subr.mxu0 0.0
  %1981 = vmatpush1.msra.mxu0 0.0
  %1982 = vmatprep.subr.mxu0 0.0
  %1983 = vmatpush1.msra.mxu0 0.0
  %1984 = vmatprep.subr.mxu0 0.0
  %1985 = vmatpush1.msra.mxu0 0.0
  %1986 = vmatprep.subr.mxu0 0.0
  %1987 = vmatpush1.msra.mxu0 0.0
  %1988 = vmatprep.subr.mxu0 0.0
  %1989 = vmatpush1.msra.mxu0 0.0
  %1990 = vmatprep.subr.mxu0 0.0
  %1991 = vmatpush1.msra.mxu0 0.0
  %1992 = vmatprep.mubr.f32.mxu0 0.0
  %1993 = vmatmul.mubr.f32.gmra.mrb[0].mxu0 %v1893
  %v1994 = vpop.f32.mrb[0].mxu0
  %v1995 = vadd.f32 %v1890, %v1994
  %v1996 = vpop.f32.mrb[0].mxu0
  %1997 = vmatprep.mubr.f32.mxu0 0.0
  %1998 = vmatmul.mubr.f32.gmra.mrb[0].mxu0 %v1896
  %v1999 = vpop.f32.mrb[0].mxu0
  %v2000 = vadd.f32 %v1890, %v1999
  %v2001 = vpop.f32.mrb[0].mxu0
  %2002 = vmatprep.mubr.f32.mxu0 0.0
  %2003 = vmatmul.mubr.f32.gmra.mrb[0].mxu0 %v1899
  %v2004 = vpop.f32.mrb[0].mxu0
  %v2005 = vadd.f32 %v1890, %v2004
  %v2006 = vpop.f32.mrb[0].mxu0
  %2007 = vmatprep.mubr.f32.mxu0 0.0
  %2008 = vmatmul.mubr.f32.gmra.mrb[0].mxu0 %v1902
  %v2009 = vpop.f32.mrb[0].mxu0
  %v2010 = vadd.f32 %v1890, %v2009
  %v2011 = vpop.f32.mrb[0].mxu0
  %2012 = vmatprep.mubr.f32.mxu0 0.0
  %2013 = vmatmul.mubr.f32.gmra.mrb[0].mxu0 %v1905
  %v2014 = vpop.f32.mrb[0].mxu0
  %v2015 = vadd.f32 %v1890, %v2014
  %v2016 = vpop.f32.mrb[0].mxu0
  %2017 = vmatprep.mubr.f32.mxu0 0.0
  %2018 = vmatmul.mubr.f32.gmra.mrb[0].mxu0 %v1908
  %v2019 = vpop.f32.mrb[0].mxu0
  %v2020 = vadd.f32 %v1890, %v2019
  %v2021 = vpop.f32.mrb[0].mxu0
  %2022 = vmatprep.mubr.f32.mxu0 0.0
  %2023 = vmatmul.mubr.f32.gmra.mrb[0].mxu0 %v1911
  %v2024 = vpop.f32.mrb[0].mxu0
  %v2025 = vadd.f32 %v1890, %v2024
  %v2026 = vpop.f32.mrb[0].mxu0
  %2027 = vmatprep.mubr.f32.mxu0 0.0
  %2028 = vmatmul.mubr.f32.gmra.mrb[0].mxu0 %v1914
  %v2029 = vpop.f32.mrb[0].mxu0
  %v2030 = vadd.f32 %v1890, %v2029
  %v2031 = vpop.f32.mrb[0].mxu0
  %2032 = vmatprep.mubr.f32.mxu0 0.0
  %2033 = vmatmul.mubr.f32.gmra.mrb[0].mxu0 %v1917
  %v2034 = vpop.f32.mrb[0].mxu0
  %v2035 = vadd.f32 %v1890, %v2034
  %v2036 = vpop.f32.mrb[0].mxu0
  %2037 = vmatprep.mubr.f32.mxu0 0.0
  %2038 = vmatmul.mubr.f32.gmra.mrb[0].mxu0 %v1920
  %v2039 = vpop.f32.mrb[0].mxu0
  %v2040 = vadd.f32 %v1890, %v2039
  %v2041 = vpop.f32.mrb[0].mxu0
  %2042 = vmatprep.mubr.f32.mxu0 0.0
  %2043 = vmatmul.mubr.f32.gmra.mrb[0].mxu0 %v1923
  %v2044 = vpop.f32.mrb[0].mxu0
  %v2045 = vadd.f32 %v1890, %v2044
  %v2046 = vpop.f32.mrb[0].mxu0
  %2047 = vmatprep.mubr.f32.mxu0 0.0
  %2048 = vmatmul.mubr.f32.gmra.mrb[0].mxu0 %v1926
  %v2049 = vpop.f32.mrb[0].mxu0
  %v2050 = vadd.f32 %v1890, %v2049
  %v2051 = vpop.f32.mrb[0].mxu0
  %2052 = vdwg.mxu0
  %v2053 = vxor.u32 %v1995, 2147483648
  %v2054 = vxor.u32 %v2000, 2147483648
  %v2055 = vxor.u32 %v2005, 2147483648
  %v2056 = vxor.u32 %v2010, 2147483648
  %v2057 = vxor.u32 %v2015, 2147483648
  %v2058 = vxor.u32 %v2020, 2147483648
  %v2059 = vxor.u32 %v2025, 2147483648
  %v2060 = vxor.u32 %v2030, 2147483648
  %v2061 = vxor.u32 %v2035, 2147483648
  %v2062 = vxor.u32 %v2040, 2147483648
  %v2063 = vxor.u32 %v2045, 2147483648
  %v2064 = vxor.u32 %v2050, 2147483648
  %v2065 = vmul.f32 %v2053, 1.442695
  %v2066 = vpow.pop %v2065
  %v2067 = vmul.f32 %v2054, 1.442695
  %v2068 = vpow.pop %v2067
  %v2069 = vmul.f32 %v2055, 1.442695
  %v2070 = vpow.pop %v2069
  %v2071 = vmul.f32 %v2056, 1.442695
  %v2072 = vpow.pop %v2071
  %v2073 = vmul.f32 %v2057, 1.442695
  %v2074 = vpow.pop %v2073
  %v2075 = vmul.f32 %v2058, 1.442695
  %v2076 = vpow.pop %v2075
  %v2077 = vmul.f32 %v2059, 1.442695
  %v2078 = vpow.pop %v2077
  %v2079 = vmul.f32 %v2060, 1.442695
  %v2080 = vpow.pop %v2079
  %v2081 = vmul.f32 %v2061, 1.442695
  %v2082 = vpow.pop %v2081
  %v2083 = vmul.f32 %v2062, 1.442695
  %v2084 = vpow.pop %v2083
  %v2085 = vmul.f32 %v2063, 1.442695
  %v2086 = vpow.pop %v2085
  %v2087 = vmul.f32 %v2064, 1.442695
  %v2088 = vpow.pop %v2087
  %v2089 = vadd.f32 %v2066, 1.0
  %v2090 = vadd.f32 %v2068, 1.0
  %v2091 = vadd.f32 %v2070, 1.0
  %v2092 = vadd.f32 %v2072, 1.0
  %v2093 = vadd.f32 %v2074, 1.0
  %v2094 = vadd.f32 %v2076, 1.0
  %v2095 = vadd.f32 %v2078, 1.0
  %v2096 = vadd.f32 %v2080, 1.0
  %v2097 = vadd.f32 %v2082, 1.0
  %v2098 = vadd.f32 %v2084, 1.0
  %v2099 = vadd.f32 %v2086, 1.0
  %v2100 = vadd.f32 %v2088, 1.0
  %v2101 = vrcp.pop %v2089
  %v2102 = vmul.f32 1.0, %v2101
  %v2103 = vrcp.pop %v2090
  %v2104 = vmul.f32 1.0, %v2103
  %v2105 = vrcp.pop %v2091
  %v2106 = vmul.f32 1.0, %v2105
  %v2107 = vrcp.pop %v2092
  %v2108 = vmul.f32 1.0, %v2107
  %v2109 = vrcp.pop %v2093
  %v2110 = vmul.f32 1.0, %v2109
  %v2111 = vrcp.pop %v2094
  %v2112 = vmul.f32 1.0, %v2111
  %v2113 = vrcp.pop %v2095
  %v2114 = vmul.f32 1.0, %v2113
  %v2115 = vrcp.pop %v2096
  %v2116 = vmul.f32 1.0, %v2115
  %v2117 = vrcp.pop %v2097
  %v2118 = vmul.f32 1.0, %v2117
  %v2119 = vrcp.pop %v2098
  %v2120 = vmul.f32 1.0, %v2119
  %v2121 = vrcp.pop %v2099
  %v2122 = vmul.f32 1.0, %v2121
  %v2123 = vrcp.pop %v2100
  %v2124 = vmul.f32 1.0, %v2123
  %v2125 = vld [vmem:[%s7] sm:$0xff]
  %v2126 = vld [vmem:[%s7 + $0x8] sm:$0xff]
  %v2127 = vld [vmem:[%s7 + $0x10] sm:$0xff]
  %v2128 = vld [vmem:[%s7 + $0x18] sm:$0x3f]
  %vm2129 = vcmask 244736
  %v2131 = vsel %vm2129, %v2102, 0
  %v2134 = vsel %vm2129, %v2104, 0
  %v2137 = vsel %vm2129, %v2106, 0
  %v2140 = vsel %vm2129, %v2108, 0
  %v2143 = vsel %vm2129, %v2110, 0
  %v2146 = vsel %vm2129, %v2112, 0
  %v2149 = vsel %vm2129, %v2114, 0
  %v2152 = vsel %vm2129, %v2116, 0
  %v2155 = vsel %vm2129, %v2118, 0
  %v2158 = vsel %vm2129, %v2120, 0
  %v2161 = vsel %vm2129, %v2122, 0
  %v2164 = vsel %vm2129, %v2124, 0
  %vm2166 = vcmask 1045504
  %v2168 = vsel %vm2166, %v2128, 0
  %2170 = vmatprep.subr.mxu0 0.0
  %2171 = vmatpush1.msra.mxu0 %v2125
  %2172 = vmatprep.subr.mxu0 0.0
  %2173 = vmatpush1.msra.mxu0 %v2126
  %2174 = vmatprep.subr.mxu0 0.0
  %2175 = vmatpush1.msra.mxu0 %v2127
  %2176 = vmatprep.subr.mxu0 0.0
  %2177 = vmatpush1.msra.mxu0 %v2168
  %2178 = vmatprep.subr.mxu0 0.0
  %2179 = vmatpush1.msra.mxu0 0.0
  %2180 = vmatprep.subr.mxu0 0.0
  %2181 = vmatpush1.msra.mxu0 0.0
  %2182 = vmatprep.subr.mxu0 0.0
  %2183 = vmatpush1.msra.mxu0 0.0
  %2184 = vmatprep.subr.mxu0 0.0
  %2185 = vmatpush1.msra.mxu0 0.0
  %2186 = vmatprep.subr.mxu0 0.0
  %2187 = vmatpush1.msra.mxu0 0.0
  %2188 = vmatprep.subr.mxu0 0.0
  %2189 = vmatpush1.msra.mxu0 0.0
  %2190 = vmatprep.subr.mxu0 0.0
  %2191 = vmatpush1.msra.mxu0 0.0
  %2192 = vmatprep.subr.mxu0 0.0
  %2193 = vmatpush1.msra.mxu0 0.0
  %2194 = vmatprep.subr.mxu0 0.0
  %2195 = vmatpush1.msra.mxu0 0.0
  %2196 = vmatprep.subr.mxu0 0.0
  %2197 = vmatpush1.msra.mxu0 0.0
  %2198 = vmatprep.subr.mxu0 0.0
  %2199 = vmatpush1.msra.mxu0 0.0
  %2200 = vmatprep.subr.mxu0 0.0
  %2201 = vmatpush1.msra.mxu0 0.0
  %2202 = vmatprep.subr.mxu0 0.0
  %2203 = vmatpush1.msra.mxu0 0.0
  %2204 = vmatprep.subr.mxu0 0.0
  %2205 = vmatpush1.msra.mxu0 0.0
  %2206 = vmatprep.subr.mxu0 0.0
  %2207 = vmatpush1.msra.mxu0 0.0
  %2208 = vmatprep.subr.mxu0 0.0
  %2209 = vmatpush1.msra.mxu0 0.0
  %2210 = vmatprep.subr.mxu0 0.0
  %2211 = vmatpush1.msra.mxu0 0.0
  %2212 = vmatprep.subr.mxu0 0.0
  %2213 = vmatpush1.msra.mxu0 0.0
  %2214 = vmatprep.subr.mxu0 0.0
  %2215 = vmatpush1.msra.mxu0 0.0
  %2216 = vmatprep.subr.mxu0 0.0
  %2217 = vmatpush1.msra.mxu0 0.0
  %2218 = vmatprep.subr.mxu0 0.0
  %2219 = vmatpush1.msra.mxu0 0.0
  %2220 = vmatprep.subr.mxu0 0.0
  %2221 = vmatpush1.msra.mxu0 0.0
  %2222 = vmatprep.subr.mxu0 0.0
  %2223 = vmatpush1.msra.mxu0 0.0
  %2224 = vmatprep.subr.mxu0 0.0
  %2225 = vmatpush1.msra.mxu0 0.0
  %2226 = vmatprep.subr.mxu0 0.0
  %2227 = vmatpush1.msra.mxu0 0.0
  %2228 = vmatprep.subr.mxu0 0.0
  %2229 = vmatpush1.msra.mxu0 0.0
  %2230 = vmatprep.subr.mxu0 0.0
  %2231 = vmatpush1.msra.mxu0 0.0
  %2232 = vmatprep.subr.mxu0 0.0
  %2233 = vmatpush1.msra.mxu0 0.0
  %2234 = vmatprep.mubr.f32.mxu0 0.0
  %2235 = vmatmul.mubr.f32.gmra.mrb[0].mxu0 %v2131
  %v2236 = vpop.f32.mrb[0].mxu0
  %v2237 = vadd.f32 0.0, %v2236
  %v2238 = vpop.f32.mrb[0].mxu0
  %2239 = vmatprep.mubr.f32.mxu0 0.0
  %2240 = vmatmul.mubr.f32.gmra.mrb[0].mxu0 %v2134
  %v2241 = vpop.f32.mrb[0].mxu0
  %v2242 = vadd.f32 0.0, %v2241
  %v2243 = vpop.f32.mrb[0].mxu0
  %2244 = vmatprep.mubr.f32.mxu0 0.0
  %2245 = vmatmul.mubr.f32.gmra.mrb[0].mxu0 %v2137
  %v2246 = vpop.f32.mrb[0].mxu0
  %v2247 = vadd.f32 0.0, %v2246
  %v2248 = vpop.f32.mrb[0].mxu0
  %2249 = vmatprep.mubr.f32.mxu0 0.0
  %2250 = vmatmul.mubr.f32.gmra.mrb[0].mxu0 %v2140
  %v2251 = vpop.f32.mrb[0].mxu0
  %v2252 = vadd.f32 0.0, %v2251
  %v2253 = vpop.f32.mrb[0].mxu0
  %2254 = vmatprep.mubr.f32.mxu0 0.0
  %2255 = vmatmul.mubr.f32.gmra.mrb[0].mxu0 %v2143
  %v2256 = vpop.f32.mrb[0].mxu0
  %v2257 = vadd.f32 0.0, %v2256
  %v2258 = vpop.f32.mrb[0].mxu0
  %2259 = vmatprep.mubr.f32.mxu0 0.0
  %2260 = vmatmul.mubr.f32.gmra.mrb[0].mxu0 %v2146
  %v2261 = vpop.f32.mrb[0].mxu0
  %v2262 = vadd.f32 0.0, %v2261
  %v2263 = vpop.f32.mrb[0].mxu0
  %2264 = vmatprep.mubr.f32.mxu0 0.0
  %2265 = vmatmul.mubr.f32.gmra.mrb[0].mxu0 %v2149
  %v2266 = vpop.f32.mrb[0].mxu0
  %v2267 = vadd.f32 0.0, %v2266
  %v2268 = vpop.f32.mrb[0].mxu0
  %2269 = vmatprep.mubr.f32.mxu0 0.0
  %2270 = vmatmul.mubr.f32.gmra.mrb[0].mxu0 %v2152
  %v2271 = vpop.f32.mrb[0].mxu0
  %v2272 = vadd.f32 0.0, %v2271
  %v2273 = vpop.f32.mrb[0].mxu0
  %2274 = vmatprep.mubr.f32.mxu0 0.0
  %2275 = vmatmul.mubr.f32.gmra.mrb[0].mxu0 %v2155
  %v2276 = vpop.f32.mrb[0].mxu0
  %v2277 = vadd.f32 0.0, %v2276
  %v2278 = vpop.f32.mrb[0].mxu0
  %2279 = vmatprep.mubr.f32.mxu0 0.0
  %2280 = vmatmul.mubr.f32.gmra.mrb[0].mxu0 %v2158
  %v2281 = vpop.f32.mrb[0].mxu0
  %v2282 = vadd.f32 0.0, %v2281
  %v2283 = vpop.f32.mrb[0].mxu0
  %2284 = vmatprep.mubr.f32.mxu0 0.0
  %2285 = vmatmul.mubr.f32.gmra.mrb[0].mxu0 %v2161
  %v2286 = vpop.f32.mrb[0].mxu0
  %v2287 = vadd.f32 0.0, %v2286
  %v2288 = vpop.f32.mrb[0].mxu0
  %2289 = vmatprep.mubr.f32.mxu0 0.0
  %2290 = vmatmul.mubr.f32.gmra.mrb[0].mxu0 %v2164
  %v2291 = vpop.f32.mrb[0].mxu0
  %v2292 = vadd.f32 0.0, %v2291
  %v2293 = vpop.f32.mrb[0].mxu0
  %2294 = vdwg.mxu0
  %v2295 = vld [vmem:[%s3] sm:$0xf]
  %v2296 = vld [vmem:[%s3 + $0x4] sm:$0xf]
  %v2297 = vld [vmem:[%s3 + $0x8] sm:$0xf]
  %v2298 = vld [vmem:[%s3 + $0xc] sm:$0xf]
  %v2299 = vpack.c.bf16 %v2242, %v2237
  %v2300 = vpack.c.bf16 %v2252, %v2247
  %v2301 = vpack.c.bf16 %v2262, %v2257
  %v2302 = vpack.c.bf16 %v2272, %v2267
  %v2303 = vpack.c.bf16 %v2282, %v2277
  %v2304 = vpack.c.bf16 %v2292, %v2287
  %v2305 = vld [vmem:[%s7 + $0x1e] sm:$0x1]
  %v2306 = vlaneseq
  %v2307 = vshrl.u32 %v2306, 7
  %v2308 = vsub.s32 0, %v2307
  %v2309 = vrot.slane %v2305, %v2308
  %v2314 = vunpack.c.l.b16 %v2295
  %v2315 = vunpack.c.l.b16 %v2296
  %v2316 = vunpack.c.l.b16 %v2297
  %v2317 = vunpack.c.l.b16 %v2298
  %v2318 = vpack.c.b16 %v2315, %v2314
  %v2319 = vpack.c.b16 %v2317, %v2316
  %vm2320 = vcmask 785408
  %v2322 = vsel %vm2320, %v2318, 0
  %v2325 = vsel %vm2320, %v2319, 0
  %2327 = vmatprep.subr.bf16.mxu0 0
  %2328 = vmatpush1.bf16.msra.mxu0 %v2299
  %2329 = vmatprep.subr.bf16.mxu0 0
  %2330 = vmatpush1.bf16.msra.mxu0 %v2300
  %2331 = vmatprep.subr.bf16.mxu0 0
  %2332 = vmatpush1.bf16.msra.mxu0 %v2301
  %2333 = vmatprep.subr.bf16.mxu0 0
  %2334 = vmatpush1.bf16.msra.mxu0 %v2302
  %2335 = vmatprep.subr.bf16.mxu0 0
  %2336 = vmatpush1.bf16.msra.mxu0 %v2303
  %2337 = vmatprep.subr.bf16.mxu0 0
  %2338 = vmatpush1.bf16.msra.mxu0 %v2304
  %2339 = vmatprep.subr.bf16.mxu0 0
  %2340 = vmatpush1.bf16.msra.mxu0 0
  %2341 = vmatprep.subr.bf16.mxu0 0
  %2342 = vmatpush1.bf16.msra.mxu0 0
  %2343 = vmatprep.subr.bf16.mxu0 0
  %2344 = vmatpush1.bf16.msra.mxu0 0
  %2345 = vmatprep.subr.bf16.mxu0 0
  %2346 = vmatpush1.bf16.msra.mxu0 0
  %2347 = vmatprep.subr.bf16.mxu0 0
  %2348 = vmatpush1.bf16.msra.mxu0 0
  %2349 = vmatprep.subr.bf16.mxu0 0
  %2350 = vmatpush1.bf16.msra.mxu0 0
  %2351 = vmatprep.subr.bf16.mxu0 0
  %2352 = vmatpush1.bf16.msra.mxu0 0
  %2353 = vmatprep.subr.bf16.mxu0 0
  %2354 = vmatpush1.bf16.msra.mxu0 0
  %2355 = vmatprep.subr.bf16.mxu0 0
  %2356 = vmatpush1.bf16.msra.mxu0 0
  %2357 = vmatprep.subr.bf16.mxu0 0
  %2358 = vmatpush1.bf16.msra.mxu0 0
  %2359 = vmatprep.mubr.bf16.mxu0 0
  %2360 = vmatmul.mubr.bf16.gmra.mrb[0].mxu0 %v2322
  %v2361 = vpop.f32.mrb[0].mxu0
  %v2362 = vadd.f32 %v2309, %v2361
  %v2363 = vpop.f32.mrb[0].mxu0
  %v2364 = vpop.f32.mrb[0].mxu0
  %v2365 = vadd.f32 %v2309, %v2364
  %v2366 = vpop.f32.mrb[0].mxu0
  %2367 = vmatprep.mubr.bf16.mxu0 0
  %2368 = vmatmul.mubr.bf16.gmra.mrb[0].mxu0 %v2325
  %v2369 = vpop.f32.mrb[0].mxu0
  %v2370 = vadd.f32 %v2309, %v2369
  %v2371 = vpop.f32.mrb[0].mxu0
  %v2372 = vpop.f32.mrb[0].mxu0
  %v2373 = vadd.f32 %v2309, %v2372
  %v2374 = vpop.f32.mrb[0].mxu0
  %2375 = vdwg.mxu0
  %v2376 = vxor.u32 %v2362, 2147483648
  %v2377 = vxor.u32 %v2365, 2147483648
  %v2378 = vxor.u32 %v2370, 2147483648
  %v2379 = vxor.u32 %v2373, 2147483648
  %v2380 = vmul.f32 %v2376, 1.442695
  %v2381 = vpow.pop %v2380
  %v2382 = vmul.f32 %v2377, 1.442695
  %v2383 = vpow.pop %v2382
  %v2384 = vmul.f32 %v2378, 1.442695
  %v2385 = vpow.pop %v2384
  %v2386 = vmul.f32 %v2379, 1.442695
  %v2387 = vpow.pop %v2386
  %v2388 = vadd.f32 %v2381, 1.0
  %v2389 = vadd.f32 %v2383, 1.0
  %v2390 = vadd.f32 %v2385, 1.0
  %v2391 = vadd.f32 %v2387, 1.0
  %v2392 = vrcp.pop %v2388
  %v2393 = vmul.f32 1.0, %v2392
  %v2394 = vrcp.pop %v2389
  %v2395 = vmul.f32 1.0, %v2394
  %v2396 = vrcp.pop %v2390
  %v2397 = vmul.f32 1.0, %v2396
  %v2398 = vrcp.pop %v2391
  %v2399 = vmul.f32 1.0, %v2398
  %vm2400 = vcmask 64512
  %2401 = vst.msk [vmem:[%s8] sm:$0xff] %vm2400, %v2393
  %2402 = vst.msk [vmem:[%s8 + $0x8] sm:$0xff] %vm2400, %v2395
  %2403 = vst.msk [vmem:[%s8 + $0x10] sm:$0xff] %vm2400, %v2397
  %2404 = vst.msk [vmem:[%s8 + $0x18] sm:$0xff] %vm2400, %v2399
  // Predicated region
  $region34: #{tpu_custom_call.1} parent=0 // pred_check
    _
  $region35: #{tpu_custom_call.1} parent=0 // pred_check_branch
    %2406 = sbr.rel (0) target = $region37
  $region36: #{tpu_custom_call.1} parent=0 // pred_region
    _
  $region37: #{tpu_custom_call.1} parent=0 // pred_fallthru
    _
  // Predicated region
  $region38: #{tpu_custom_call.1} parent=0 // pred_check
    _
  $region39: #{tpu_custom_call.1} parent=0 // pred_check_branch
    %2408 = sbr.rel (0) target = $region41
  $region40: #{tpu_custom_call.1} parent=0 // pred_region
    _
  $region41: #{tpu_custom_call.1} parent=0 // pred_fallthru
    _

</llo_original>
